<compile_context>
chip_gen: v7x
topology: tpu7x:2x2x1
jax: 0.10.0
libtpu: 0.0.40
codegen_flags: <defaults>
</compile_context>

<pallas_src>
import jax
import jax.numpy as jnp
import numpy as np
from jax.experimental import pallas as pl
from jax.experimental.pallas import tpu as pltpu


# ----------------------------------------------------------------------------
# Fused kernel: q/k/v linears + AFT weighting + sigmoid gate + out linear +
# (view-scramble . im2col . conv) + channels_first LayerNorm.
# ----------------------------------------------------------------------------
def aft_full_fused_kernel(xT_ref, wqkv_ref, bqkv_ref, wo_ref, bo_ref,
                          w3c0_ref, w3c1_ref, w3c2_ref,
                          cbias_ref, gamma_ref, beta_ref, o_ref):
    C, BL = xT_ref.shape              # C = dim (=3), BL = B * H*W
    Hd = wqkv_ref.shape[0] // 3       # hidden_dim
    B, M = o_ref.shape                # M = Cout * Ho*Wo
    L = BL // B
    Cout = C
    P = M // Cout

    xT = xT_ref[...]                                       # (C, B*L)
    wqkv = wqkv_ref[...]                                    # (3*Hd, C)

    # Fused q/k/v projection as broadcast-FMAs (contraction depth C=3).
    qkv = wqkv[:, 0:1] * xT[0:1, :]
    for c in range(1, C):
        qkv = qkv + wqkv[:, c:c + 1] * xT[c:c + 1, :]
    qkv = qkv + bqkv_ref[...]                               # (3*Hd, B*L)

    qT = qkv[0:Hd, :]
    kT = qkv[Hd:2 * Hd, :]
    vT = qkv[2 * Hd:3 * Hd, :]

    # Reference takes max_k over the *batch* dim (couples the examples).
    max_kT = kT[:, 0:L]
    for b in range(1, B):
        max_kT = jnp.maximum(max_kT, kT[:, b * L:(b + 1) * L])

    # AFT core.  exp_w_bias == 1 exactly (max over a size-1 dim in the
    # reference), so num/den are length-axis sums broadcast over queries.
    y_blocks = []
    for b in range(B):
        sl = slice(b * L, (b + 1) * L)
        ek = jnp.exp(kT[:, sl] - max_kT)                    # (Hd, L), <= 1
        s_num = jnp.sum(ek * vT[:, sl], axis=1, keepdims=True)   # (Hd, 1)
        s_den = jnp.sum(ek, axis=1, keepdims=True)          # (Hd, 1)
        r = s_num / s_den                                   # exact divide (Hd values)
        sig = 0.5 * (jnp.tanh(0.5 * qT[:, sl]) + 1.0)       # exact sigmoid, 1 EUP op
        y_blocks.append(sig * r)
    yT = jnp.concatenate(y_blocks, axis=1)                  # (Hd, B*L), 128-aligned

    # Output linear, still feature-major (length stays on lanes).
    outT = (jnp.dot(wo_ref[...], yT, preferred_element_type=jnp.float32)
            + bo_ref[...])                                  # (C, B*L)

    # Downsample: raw-view scramble + im2col + conv folded into W3[cc] (L, M);
    # conv_out[b, cout*P+p] = sum_cc sum_l out_lin[b,l,cc] * W3[cc][l, cout*P+p].
    w3 = (w3c0_ref[...], w3c1_ref[...], w3c2_ref[...])      # each (L, M)
    cbias = cbias_ref[...]                                   # (1, M)
    gamma = gamma_ref[...]                                   # (1, M)
    beta = beta_ref[...]                                     # (1, M)

    for b in range(B):
        conv = cbias
        for cc in range(C):
            lhs = outT[cc:cc + 1, b * L:(b + 1) * L]         # (1, L), aligned slice
            conv = conv + jnp.dot(lhs, w3[cc],
                                  preferred_element_type=jnp.float32)  # (1, M)
        # channels_first LayerNorm over Cout (columns are cout-major blocks of P).
        ch = [conv[:, c * P:(c + 1) * P] for c in range(Cout)]
        u = ch[0]
        for c in range(1, Cout):
            u = u + ch[c]
        u = u * (1.0 / Cout)
        var = (ch[0] - u) ** 2
        for c in range(1, Cout):
            var = var + (ch[c] - u) ** 2
        var = var * (1.0 / Cout)
        inv = jax.lax.rsqrt(var + 1e-6)
        for c in range(Cout):
            xn = (ch[c] - u) * inv
            o_ref[b:b + 1, c * P:(c + 1) * P] = (
                gamma[:, c * P:(c + 1) * P] * xn + beta[:, c * P:(c + 1) * P])


# ----------------------------------------------------------------------------
# Static weight folding: raw view (B,L,C)->(B,C,H,W) + 4x4/stride-4 im2col +
# conv weight, collapsed to one (L, Cout*P) matrix per out_lin channel cc.
# ----------------------------------------------------------------------------
def _fold_downsample_weights(conv_w, C, H, W, Ho, Wo):
    Cout, Cin, kh, kw = conv_w.shape
    L = H * W
    P = Ho * Wo
    cout_i, p_i, cin_i, dh_i, dw_i = np.meshgrid(
        np.arange(Cout), np.arange(P), np.arange(Cin),
        np.arange(kh), np.arange(kw), indexing="ij")
    cout_i, p_i, cin_i, dh_i, dw_i = [a.ravel()
                                      for a in (cout_i, p_i, cin_i, dh_i, dw_i)]
    ph, pw = p_i // Wo, p_i % Wo
    h = 4 * ph + dh_i                          # stride 4, kernel 4
    w = 4 * pw + dw_i
    f = cin_i * (H * W) + h * W + w            # flat index in the (C,H,W) raw view
    l_i = f // C                               # row of out_lin (B, L, C)
    cc_i = f % C                               # column of out_lin
    m_i = cout_i * P + p_i
    vals = conv_w[cout_i, cin_i, dh_i, dw_i]
    return jnp.zeros((C, L, Cout * P), jnp.float32).at[cc_i, l_i, m_i].set(vals)


# ----------------------------------------------------------------------------
# Wrapper: parameter folding + single fused pallas_call + mask downsample.
# ----------------------------------------------------------------------------
def aft_full_forward(x, mask, params):
    B, C, H, W = x.shape
    assert C == 3 and H % 4 == 0 and W % 4 == 0   # module fixes Conv2d(3, 3, 4, 4)
    L = H * W
    Ho, Wo = H // 4, W // 4
    P = Ho * Wo
    Hd = params['wq'].shape[1]
    Cout = params['conv_w'].shape[0]

    # Parameter folding (tiny; in a real model this happens once at load time).
    # NOTE: params['u'] / params['v'] are mathematically unused by the forward
    # (exp_w_bias is identically 1); kept in the dict only for module parity.
    wqkv_t = jnp.concatenate(
        [params['wq'].T, params['wk'].T, params['wv'].T], axis=0)      # (3Hd, C)
    bqkv_t = jnp.concatenate(
        [params['bq'], params['bk'], params['bv']], axis=1).reshape(3 * Hd, 1)
    wo_t = params['wo'].T                                              # (C, Hd)
    bo_t = params['bo'].reshape(C, 1)
    w3 = _fold_downsample_weights(params['conv_w'], C, H, W, Ho, Wo)   # (C, L, Cout*P)
    cbias = jnp.repeat(params['conv_b'], P)[None, :]                   # (1, Cout*P)
    gamma = jnp.repeat(params['gamma'], P)[None, :]
    beta = jnp.repeat(params['beta'], P)[None, :]

    # torch: x.reshape(B, H, W, C) is a raw view -> flattened (B*L, C); transpose
    # to feature-major so the length axis sits on lanes inside the kernel.
    xT = x.reshape(B * L, C).T                                         # (C, B*L)

    vmem = pl.BlockSpec(memory_space=pltpu.MemorySpace.VMEM)
    out_flat = pl.pallas_call(
        aft_full_fused_kernel,
        out_shape=jax.ShapeDtypeStruct((B, Cout * P), jnp.float32),
        in_specs=[vmem] * 11,
        out_specs=vmem,
    )(xT, wqkv_t, bqkv_t, wo_t, bo_t, w3[0], w3[1], w3[2], cbias, gamma, beta)

    out = out_flat.reshape(B, Cout, Ho, Wo)                            # free reshape

    # NestedTensor mask path: F.interpolate(mask, size=(Ho, Wo)) nearest -> bool.
    mask_ds = mask[:, ::H // Ho, ::W // Wo]
    # TODO(synk): NestedTensor wrapper has no Pallas/JAX equivalent; returning a
    # plain {idx: (tensor, mask)} dict instead.
    return {0: (out, mask_ds)}


# ----------------------------------------------------------------------------
# Literal pure-JAX reference (keeps the u@v.T / exp_w_bias path, real conv) to
# verify the fused kernel preserves the module's forward semantics.
# ----------------------------------------------------------------------------
def reference_forward(x, p):
    B, C, H, W = x.shape
    L = H * W
    xf = x.reshape(B, L, C)
    q = xf @ p['wq'] + p['bq']
    k = xf @ p['wk'] + p['bk']
    v = xf @ p['wv'] + p['bv']
    w = p['u'] @ p['v'].T
    w_bias = w[:L, :L][None]
    max_k = k.max(axis=0, keepdims=True)
    max_w = w_bias.max(axis=0, keepdims=True)
    exp_k = jnp.exp(k - max_k)
    exp_w = jnp.exp(w_bias - max_w)
    num = exp_w @ (exp_k * v)
    den = exp_w @ exp_k
    y = jax.nn.sigmoid(q) * num / den
    y = (y @ p['wo'] + p['bo']).reshape(B, C, H, W)
    conv = jax.lax.conv_general_dilated(
        y, p['conv_w'], (4, 4), 'VALID',
        dimension_numbers=('NCHW', 'OIHW', 'NCHW')) + p['conv_b'][None, :, None, None]
    u_ = conv.mean(axis=1, keepdims=True)
    s_ = ((conv - u_) ** 2).mean(axis=1, keepdims=True)
    ln = (conv - u_) / jnp.sqrt(s_ + 1e-6)
    return p['gamma'][None, :, None, None] * ln + p['beta'][None, :, None, None]


if __name__ == "__main__":
    B, C, H, W = 2, 3, 16, 16          # dim=3 is forced by Conv2d(3, 3, ...)
    hidden_dim = 32
    max_len = 512

    key = jax.random.PRNGKey(0)
    ks = jax.random.split(key, 16)

    def lin(kw, kb, fin, fout):
        bound = 1.0 / np.sqrt(fin)
        w = jax.random.uniform(kw, (fin, fout), jnp.float32, -bound, bound)
        b = jax.random.uniform(kb, (1, fout), jnp.float32, -bound, bound)
        return w, b

    wq, bq = lin(ks[0], ks[1], C, hidden_dim)
    wk, bk = lin(ks[2], ks[3], C, hidden_dim)
    wv, bv = lin(ks[4], ks[5], C, hidden_dim)
    wo, bo = lin(ks[6], ks[7], hidden_dim, C)
    u_param = 0.01 * jax.random.normal(ks[8], (max_len, hidden_dim), jnp.float32)
    v_param = 0.01 * jax.random.normal(ks[9], (max_len, hidden_dim), jnp.float32)
    cb = 1.0 / np.sqrt(C * 4 * 4)
    conv_w = jax.random.uniform(ks[10], (3, 3, 4, 4), jnp.float32, -cb, cb)
    conv_b = jax.random.uniform(ks[11], (3,), jnp.float32, -cb, cb)
    gamma = jnp.ones((3,), jnp.float32)
    beta = jnp.zeros((3,), jnp.float32)

    params = dict(wq=wq, bq=bq, wk=wk, bk=bk, wv=wv, bv=bv, wo=wo, bo=bo,
                  u=u_param, v=v_param, conv_w=conv_w, conv_b=conv_b,
                  gamma=gamma, beta=beta)

    x = jax.random.normal(ks[12], (B, C, H, W), jnp.float32)
    mask = jnp.zeros((B, H, W), dtype=bool)

    outs = aft_full_forward(x, mask, params)
    out0, mask0 = outs[0]
    out0 = jax.block_until_ready(out0)

    assert out0.shape == (B, 3, H // 4, W // 4)
    assert mask0.shape == (B, H // 4, W // 4)

    ref = jax.block_until_ready(reference_forward(x, params))
    np.testing.assert_allclose(np.asarray(out0), np.asarray(ref),
                               rtol=1e-2, atol=1e-3)
    print("KERNEL_OK")
</pallas_src>

<mosaic_0001>
module attributes {stable_mosaic.version = 11 : i64} {
  func.func @aft_full_fused_kernel(%arg0: memref<3x512xf32, #tpu.memory_space<vmem>>, %arg1: memref<96x3xf32, #tpu.memory_space<vmem>>, %arg2: memref<96x1xf32, #tpu.memory_space<vmem>>, %arg3: memref<3x32xf32, #tpu.memory_space<vmem>>, %arg4: memref<3x1xf32, #tpu.memory_space<vmem>>, %arg5: memref<256x48xf32, #tpu.memory_space<vmem>>, %arg6: memref<256x48xf32, #tpu.memory_space<vmem>>, %arg7: memref<256x48xf32, #tpu.memory_space<vmem>>, %arg8: memref<1x48xf32, #tpu.memory_space<vmem>>, %arg9: memref<1x48xf32, #tpu.memory_space<vmem>>, %arg10: memref<1x48xf32, #tpu.memory_space<vmem>>, %arg11: memref<2x48xf32, #tpu.memory_space<vmem>>) attributes {dimension_semantics = [], scalar_prefetch = 0 : i64, scratch_operands = 0 : i64, tpu.core_type = #tpu.core_type<tc>} {
    %c0 = arith.constant 0 : index
    %c0_0 = arith.constant 0 : index
    %0 = vector.load %arg0[%c0, %c0_0] : memref<3x512xf32, #tpu.memory_space<vmem>>, vector<3x512xf32>
    %c0_1 = arith.constant 0 : index
    %c0_2 = arith.constant 0 : index
    %1 = vector.load %arg1[%c0_1, %c0_2] : memref<96x3xf32, #tpu.memory_space<vmem>>, vector<96x3xf32>
    %2 = vector.extract_strided_slice %1 {offsets = [0, 0], sizes = [96, 1], strides = [1, 1]} : vector<96x3xf32> to vector<96x1xf32>
    %3 = vector.extract_strided_slice %0 {offsets = [0, 0], sizes = [1, 512], strides = [1, 1]} : vector<3x512xf32> to vector<1x512xf32>
    %4 = vector.broadcast %2 : vector<96x1xf32> to vector<96x512xf32>
    %5 = vector.broadcast %3 : vector<1x512xf32> to vector<96x512xf32>
    %6 = arith.mulf %4, %5 : vector<96x512xf32>
    %7 = vector.extract_strided_slice %1 {offsets = [0, 1], sizes = [96, 1], strides = [1, 1]} : vector<96x3xf32> to vector<96x1xf32>
    %8 = vector.extract_strided_slice %0 {offsets = [1, 0], sizes = [1, 512], strides = [1, 1]} : vector<3x512xf32> to vector<1x512xf32>
    %9 = vector.broadcast %7 : vector<96x1xf32> to vector<96x512xf32>
    %10 = vector.broadcast %8 : vector<1x512xf32> to vector<96x512xf32>
    %11 = arith.mulf %9, %10 : vector<96x512xf32>
    %12 = arith.addf %6, %11 : vector<96x512xf32>
    %13 = vector.extract_strided_slice %1 {offsets = [0, 2], sizes = [96, 1], strides = [1, 1]} : vector<96x3xf32> to vector<96x1xf32>
    %14 = vector.extract_strided_slice %0 {offsets = [2, 0], sizes = [1, 512], strides = [1, 1]} : vector<3x512xf32> to vector<1x512xf32>
    %15 = vector.broadcast %13 : vector<96x1xf32> to vector<96x512xf32>
    %16 = vector.broadcast %14 : vector<1x512xf32> to vector<96x512xf32>
    %17 = arith.mulf %15, %16 : vector<96x512xf32>
    %18 = arith.addf %12, %17 : vector<96x512xf32>
    %c0_3 = arith.constant 0 : index
    %c0_4 = arith.constant 0 : index
    %19 = vector.load %arg2[%c0_3, %c0_4] : memref<96x1xf32, #tpu.memory_space<vmem>>, vector<96x1xf32>
    %20 = vector.broadcast %19 : vector<96x1xf32> to vector<96x512xf32>
    %21 = arith.addf %18, %20 : vector<96x512xf32>
    %22 = vector.extract_strided_slice %21 {offsets = [0, 0], sizes = [32, 512], strides = [1, 1]} : vector<96x512xf32> to vector<32x512xf32>
    %23 = vector.extract_strided_slice %21 {offsets = [32, 0], sizes = [32, 512], strides = [1, 1]} : vector<96x512xf32> to vector<32x512xf32>
    %24 = vector.extract_strided_slice %21 {offsets = [64, 0], sizes = [32, 512], strides = [1, 1]} : vector<96x512xf32> to vector<32x512xf32>
    %25 = vector.extract_strided_slice %23 {offsets = [0, 0], sizes = [32, 256], strides = [1, 1]} : vector<32x512xf32> to vector<32x256xf32>
    %26 = vector.extract_strided_slice %23 {offsets = [0, 256], sizes = [32, 256], strides = [1, 1]} : vector<32x512xf32> to vector<32x256xf32>
    %27 = arith.maximumf %25, %26 : vector<32x256xf32>
    %28 = vector.extract_strided_slice %23 {offsets = [0, 0], sizes = [32, 256], strides = [1, 1]} : vector<32x512xf32> to vector<32x256xf32>
    %29 = arith.subf %28, %27 : vector<32x256xf32>
    %30 = math.exp %29 : vector<32x256xf32>
    %31 = vector.extract_strided_slice %24 {offsets = [0, 0], sizes = [32, 256], strides = [1, 1]} : vector<32x512xf32> to vector<32x256xf32>
    %32 = arith.mulf %30, %31 : vector<32x256xf32>
    %cst = arith.constant dense<0.000000e+00> : vector<32xf32>
    %33 = vector.multi_reduction <add>, %32, %cst [1] : vector<32x256xf32> to vector<32xf32>
    %34 = vector.shape_cast %33 : vector<32xf32> to vector<32x1xf32>
    %cst_5 = arith.constant dense<0.000000e+00> : vector<32xf32>
    %35 = vector.multi_reduction <add>, %30, %cst_5 [1] : vector<32x256xf32> to vector<32xf32>
    %36 = vector.shape_cast %35 : vector<32xf32> to vector<32x1xf32>
    %37 = arith.divf %34, %36 : vector<32x1xf32>
    %38 = vector.extract_strided_slice %22 {offsets = [0, 0], sizes = [32, 256], strides = [1, 1]} : vector<32x512xf32> to vector<32x256xf32>
    %cst_6 = arith.constant 5.000000e-01 : f32
    %39 = vector.broadcast %cst_6 : f32 to vector<32x256xf32>
    %40 = arith.mulf %39, %38 : vector<32x256xf32>
    %41 = math.tanh %40 : vector<32x256xf32>
    %cst_7 = arith.constant 1.000000e+00 : f32
    %42 = vector.broadcast %cst_7 : f32 to vector<32x256xf32>
    %43 = arith.addf %41, %42 : vector<32x256xf32>
    %cst_8 = arith.constant 5.000000e-01 : f32
    %44 = vector.broadcast %cst_8 : f32 to vector<32x256xf32>
    %45 = arith.mulf %44, %43 : vector<32x256xf32>
    %46 = vector.broadcast %37 : vector<32x1xf32> to vector<32x256xf32>
    %47 = arith.mulf %45, %46 : vector<32x256xf32>
    %48 = vector.extract_strided_slice %23 {offsets = [0, 256], sizes = [32, 256], strides = [1, 1]} : vector<32x512xf32> to vector<32x256xf32>
    %49 = arith.subf %48, %27 : vector<32x256xf32>
    %50 = math.exp %49 : vector<32x256xf32>
    %51 = vector.extract_strided_slice %24 {offsets = [0, 256], sizes = [32, 256], strides = [1, 1]} : vector<32x512xf32> to vector<32x256xf32>
    %52 = arith.mulf %50, %51 : vector<32x256xf32>
    %cst_9 = arith.constant dense<0.000000e+00> : vector<32xf32>
    %53 = vector.multi_reduction <add>, %52, %cst_9 [1] : vector<32x256xf32> to vector<32xf32>
    %54 = vector.shape_cast %53 : vector<32xf32> to vector<32x1xf32>
    %cst_10 = arith.constant dense<0.000000e+00> : vector<32xf32>
    %55 = vector.multi_reduction <add>, %50, %cst_10 [1] : vector<32x256xf32> to vector<32xf32>
    %56 = vector.shape_cast %55 : vector<32xf32> to vector<32x1xf32>
    %57 = arith.divf %54, %56 : vector<32x1xf32>
    %58 = vector.extract_strided_slice %22 {offsets = [0, 256], sizes = [32, 256], strides = [1, 1]} : vector<32x512xf32> to vector<32x256xf32>
    %cst_11 = arith.constant 5.000000e-01 : f32
    %59 = vector.broadcast %cst_11 : f32 to vector<32x256xf32>
    %60 = arith.mulf %59, %58 : vector<32x256xf32>
    %61 = math.tanh %60 : vector<32x256xf32>
    %cst_12 = arith.constant 1.000000e+00 : f32
    %62 = vector.broadcast %cst_12 : f32 to vector<32x256xf32>
    %63 = arith.addf %61, %62 : vector<32x256xf32>
    %cst_13 = arith.constant 5.000000e-01 : f32
    %64 = vector.broadcast %cst_13 : f32 to vector<32x256xf32>
    %65 = arith.mulf %64, %63 : vector<32x256xf32>
    %66 = vector.broadcast %57 : vector<32x1xf32> to vector<32x256xf32>
    %67 = arith.mulf %65, %66 : vector<32x256xf32>
    %68 = tpu.concatenate %47, %67 in 1 : vector<32x256xf32>, vector<32x256xf32> -> vector<32x512xf32>
    %c0_14 = arith.constant 0 : index
    %c0_15 = arith.constant 0 : index
    %69 = vector.load %arg3[%c0_14, %c0_15] : memref<3x32xf32, #tpu.memory_space<vmem>>, vector<3x32xf32>
    %cst_16 = arith.constant dense<0.000000e+00> : vector<3x512xf32>
    %70 = tpu.matmul %69, %68, %cst_16 {dimension_numbers = #tpu.dot_dimension_numbers<[1], [0], [0], [1], [0, 0, 1, 1], [], []>} : vector<3x32xf32>, vector<32x512xf32>, vector<3x512xf32> -> vector<3x512xf32>
    %c0_17 = arith.constant 0 : index
    %c0_18 = arith.constant 0 : index
    %71 = vector.load %arg4[%c0_17, %c0_18] : memref<3x1xf32, #tpu.memory_space<vmem>>, vector<3x1xf32>
    %72 = vector.broadcast %71 : vector<3x1xf32> to vector<3x512xf32>
    %73 = arith.addf %70, %72 : vector<3x512xf32>
    %c0_19 = arith.constant 0 : index
    %c0_20 = arith.constant 0 : index
    %74 = vector.load %arg5[%c0_19, %c0_20] : memref<256x48xf32, #tpu.memory_space<vmem>>, vector<256x48xf32>
    %c0_21 = arith.constant 0 : index
    %c0_22 = arith.constant 0 : index
    %75 = vector.load %arg6[%c0_21, %c0_22] : memref<256x48xf32, #tpu.memory_space<vmem>>, vector<256x48xf32>
    %c0_23 = arith.constant 0 : index
    %c0_24 = arith.constant 0 : index
    %76 = vector.load %arg7[%c0_23, %c0_24] : memref<256x48xf32, #tpu.memory_space<vmem>>, vector<256x48xf32>
    %c0_25 = arith.constant 0 : index
    %c0_26 = arith.constant 0 : index
    %77 = vector.load %arg8[%c0_25, %c0_26] : memref<1x48xf32, #tpu.memory_space<vmem>>, vector<1x48xf32>
    %c0_27 = arith.constant 0 : index
    %c0_28 = arith.constant 0 : index
    %78 = vector.load %arg9[%c0_27, %c0_28] : memref<1x48xf32, #tpu.memory_space<vmem>>, vector<1x48xf32>
    %c0_29 = arith.constant 0 : index
    %c0_30 = arith.constant 0 : index
    %79 = vector.load %arg10[%c0_29, %c0_30] : memref<1x48xf32, #tpu.memory_space<vmem>>, vector<1x48xf32>
    %80 = vector.extract_strided_slice %73 {offsets = [0, 0], sizes = [1, 256], strides = [1, 1]} : vector<3x512xf32> to vector<1x256xf32>
    %cst_31 = arith.constant dense<0.000000e+00> : vector<1x48xf32>
    %81 = tpu.matmul %80, %74, %cst_31 {dimension_numbers = #tpu.dot_dimension_numbers<[1], [0], [0], [1], [0, 0, 1, 1], [], []>} : vector<1x256xf32>, vector<256x48xf32>, vector<1x48xf32> -> vector<1x48xf32>
    %82 = arith.addf %77, %81 : vector<1x48xf32>
    %83 = vector.extract_strided_slice %73 {offsets = [1, 0], sizes = [1, 256], strides = [1, 1]} : vector<3x512xf32> to vector<1x256xf32>
    %cst_32 = arith.constant dense<0.000000e+00> : vector<1x48xf32>
    %84 = tpu.matmul %83, %75, %cst_32 {dimension_numbers = #tpu.dot_dimension_numbers<[1], [0], [0], [1], [0, 0, 1, 1], [], []>} : vector<1x256xf32>, vector<256x48xf32>, vector<1x48xf32> -> vector<1x48xf32>
    %85 = arith.addf %82, %84 : vector<1x48xf32>
    %86 = vector.extract_strided_slice %73 {offsets = [2, 0], sizes = [1, 256], strides = [1, 1]} : vector<3x512xf32> to vector<1x256xf32>
    %cst_33 = arith.constant dense<0.000000e+00> : vector<1x48xf32>
    %87 = tpu.matmul %86, %76, %cst_33 {dimension_numbers = #tpu.dot_dimension_numbers<[1], [0], [0], [1], [0, 0, 1, 1], [], []>} : vector<1x256xf32>, vector<256x48xf32>, vector<1x48xf32> -> vector<1x48xf32>
    %88 = arith.addf %85, %87 : vector<1x48xf32>
    %89 = vector.extract_strided_slice %88 {offsets = [0, 0], sizes = [1, 16], strides = [1, 1]} : vector<1x48xf32> to vector<1x16xf32>
    %90 = vector.extract_strided_slice %88 {offsets = [0, 16], sizes = [1, 16], strides = [1, 1]} : vector<1x48xf32> to vector<1x16xf32>
    %91 = vector.extract_strided_slice %88 {offsets = [0, 32], sizes = [1, 16], strides = [1, 1]} : vector<1x48xf32> to vector<1x16xf32>
    %92 = arith.addf %89, %90 : vector<1x16xf32>
    %93 = arith.addf %92, %91 : vector<1x16xf32>
    %cst_34 = arith.constant 0.333333343 : f32
    %94 = vector.broadcast %cst_34 : f32 to vector<1x16xf32>
    %95 = arith.mulf %93, %94 : vector<1x16xf32>
    %96 = arith.subf %89, %95 : vector<1x16xf32>
    %97 = arith.mulf %96, %96 : vector<1x16xf32>
    %98 = arith.subf %90, %95 : vector<1x16xf32>
    %99 = arith.mulf %98, %98 : vector<1x16xf32>
    %100 = arith.addf %97, %99 : vector<1x16xf32>
    %101 = arith.subf %91, %95 : vector<1x16xf32>
    %102 = arith.mulf %101, %101 : vector<1x16xf32>
    %103 = arith.addf %100, %102 : vector<1x16xf32>
    %cst_35 = arith.constant 0.333333343 : f32
    %104 = vector.broadcast %cst_35 : f32 to vector<1x16xf32>
    %105 = arith.mulf %103, %104 : vector<1x16xf32>
    %cst_36 = arith.constant 9.99999997E-7 : f32
    %106 = vector.broadcast %cst_36 : f32 to vector<1x16xf32>
    %107 = arith.addf %105, %106 : vector<1x16xf32>
    %108 = math.rsqrt %107 : vector<1x16xf32>
    %109 = arith.subf %89, %95 : vector<1x16xf32>
    %110 = arith.mulf %109, %108 : vector<1x16xf32>
    %111 = vector.extract_strided_slice %78 {offsets = [0, 0], sizes = [1, 16], strides = [1, 1]} : vector<1x48xf32> to vector<1x16xf32>
    %112 = arith.mulf %111, %110 : vector<1x16xf32>
    %113 = vector.extract_strided_slice %79 {offsets = [0, 0], sizes = [1, 16], strides = [1, 1]} : vector<1x48xf32> to vector<1x16xf32>
    %114 = arith.addf %112, %113 : vector<1x16xf32>
    %c0_37 = arith.constant 0 : index
    %c0_38 = arith.constant 0 : index
    %115 = vector.load %arg11[%c0_37, %c0_38] : memref<2x48xf32, #tpu.memory_space<vmem>>, vector<1x16xf32>
    tpu.vector_store %arg11[%c0_37, %c0_38], %114 {strides = array<i32>} : memref<2x48xf32, #tpu.memory_space<vmem>>, vector<1x16xf32>,
    %116 = arith.subf %90, %95 : vector<1x16xf32>
    %117 = arith.mulf %116, %108 : vector<1x16xf32>
    %118 = vector.extract_strided_slice %78 {offsets = [0, 16], sizes = [1, 16], strides = [1, 1]} : vector<1x48xf32> to vector<1x16xf32>
    %119 = arith.mulf %118, %117 : vector<1x16xf32>
    %120 = vector.extract_strided_slice %79 {offsets = [0, 16], sizes = [1, 16], strides = [1, 1]} : vector<1x48xf32> to vector<1x16xf32>
    %121 = arith.addf %119, %120 : vector<1x16xf32>
    %c0_39 = arith.constant 0 : index
    %c16 = arith.constant 16 : index
    %122 = vector.load %arg11[%c0_39, %c16] : memref<2x48xf32, #tpu.memory_space<vmem>>, vector<1x16xf32>
    tpu.vector_store %arg11[%c0_39, %c16], %121 {strides = array<i32>} : memref<2x48xf32, #tpu.memory_space<vmem>>, vector<1x16xf32>,
    %123 = arith.subf %91, %95 : vector<1x16xf32>
    %124 = arith.mulf %123, %108 : vector<1x16xf32>
    %125 = vector.extract_strided_slice %78 {offsets = [0, 32], sizes = [1, 16], strides = [1, 1]} : vector<1x48xf32> to vector<1x16xf32>
    %126 = arith.mulf %125, %124 : vector<1x16xf32>
    %127 = vector.extract_strided_slice %79 {offsets = [0, 32], sizes = [1, 16], strides = [1, 1]} : vector<1x48xf32> to vector<1x16xf32>
    %128 = arith.addf %126, %127 : vector<1x16xf32>
    %c0_40 = arith.constant 0 : index
    %c32 = arith.constant 32 : index
    %129 = vector.load %arg11[%c0_40, %c32] : memref<2x48xf32, #tpu.memory_space<vmem>>, vector<1x16xf32>
    tpu.vector_store %arg11[%c0_40, %c32], %128 {strides = array<i32>} : memref<2x48xf32, #tpu.memory_space<vmem>>, vector<1x16xf32>,
    %130 = vector.extract_strided_slice %73 {offsets = [0, 256], sizes = [1, 256], strides = [1, 1]} : vector<3x512xf32> to vector<1x256xf32>
    %cst_41 = arith.constant dense<0.000000e+00> : vector<1x48xf32>
    %131 = tpu.matmul %130, %74, %cst_41 {dimension_numbers = #tpu.dot_dimension_numbers<[1], [0], [0], [1], [0, 0, 1, 1], [], []>} : vector<1x256xf32>, vector<256x48xf32>, vector<1x48xf32> -> vector<1x48xf32>
    %132 = arith.addf %77, %131 : vector<1x48xf32>
    %133 = vector.extract_strided_slice %73 {offsets = [1, 256], sizes = [1, 256], strides = [1, 1]} : vector<3x512xf32> to vector<1x256xf32>
    %cst_42 = arith.constant dense<0.000000e+00> : vector<1x48xf32>
    %134 = tpu.matmul %133, %75, %cst_42 {dimension_numbers = #tpu.dot_dimension_numbers<[1], [0], [0], [1], [0, 0, 1, 1], [], []>} : vector<1x256xf32>, vector<256x48xf32>, vector<1x48xf32> -> vector<1x48xf32>
    %135 = arith.addf %132, %134 : vector<1x48xf32>
    %136 = vector.extract_strided_slice %73 {offsets = [2, 256], sizes = [1, 256], strides = [1, 1]} : vector<3x512xf32> to vector<1x256xf32>
    %cst_43 = arith.constant dense<0.000000e+00> : vector<1x48xf32>
    %137 = tpu.matmul %136, %76, %cst_43 {dimension_numbers = #tpu.dot_dimension_numbers<[1], [0], [0], [1], [0, 0, 1, 1], [], []>} : vector<1x256xf32>, vector<256x48xf32>, vector<1x48xf32> -> vector<1x48xf32>
    %138 = arith.addf %135, %137 : vector<1x48xf32>
    %139 = vector.extract_strided_slice %138 {offsets = [0, 0], sizes = [1, 16], strides = [1, 1]} : vector<1x48xf32> to vector<1x16xf32>
    %140 = vector.extract_strided_slice %138 {offsets = [0, 16], sizes = [1, 16], strides = [1, 1]} : vector<1x48xf32> to vector<1x16xf32>
    %141 = vector.extract_strided_slice %138 {offsets = [0, 32], sizes = [1, 16], strides = [1, 1]} : vector<1x48xf32> to vector<1x16xf32>
    %142 = arith.addf %139, %140 : vector<1x16xf32>
    %143 = arith.addf %142, %141 : vector<1x16xf32>
    %cst_44 = arith.constant 0.333333343 : f32
    %144 = vector.broadcast %cst_44 : f32 to vector<1x16xf32>
    %145 = arith.mulf %143, %144 : vector<1x16xf32>
    %146 = arith.subf %139, %145 : vector<1x16xf32>
    %147 = arith.mulf %146, %146 : vector<1x16xf32>
    %148 = arith.subf %140, %145 : vector<1x16xf32>
    %149 = arith.mulf %148, %148 : vector<1x16xf32>
    %150 = arith.addf %147, %149 : vector<1x16xf32>
    %151 = arith.subf %141, %145 : vector<1x16xf32>
    %152 = arith.mulf %151, %151 : vector<1x16xf32>
    %153 = arith.addf %150, %152 : vector<1x16xf32>
    %cst_45 = arith.constant 0.333333343 : f32
    %154 = vector.broadcast %cst_45 : f32 to vector<1x16xf32>
    %155 = arith.mulf %153, %154 : vector<1x16xf32>
    %cst_46 = arith.constant 9.99999997E-7 : f32
    %156 = vector.broadcast %cst_46 : f32 to vector<1x16xf32>
    %157 = arith.addf %155, %156 : vector<1x16xf32>
    %158 = math.rsqrt %157 : vector<1x16xf32>
    %159 = arith.subf %139, %145 : vector<1x16xf32>
    %160 = arith.mulf %159, %158 : vector<1x16xf32>
    %161 = vector.extract_strided_slice %78 {offsets = [0, 0], sizes = [1, 16], strides = [1, 1]} : vector<1x48xf32> to vector<1x16xf32>
    %162 = arith.mulf %161, %160 : vector<1x16xf32>
    %163 = vector.extract_strided_slice %79 {offsets = [0, 0], sizes = [1, 16], strides = [1, 1]} : vector<1x48xf32> to vector<1x16xf32>
    %164 = arith.addf %162, %163 : vector<1x16xf32>
    %c1 = arith.constant 1 : index
    %c0_47 = arith.constant 0 : index
    %165 = vector.load %arg11[%c1, %c0_47] : memref<2x48xf32, #tpu.memory_space<vmem>>, vector<1x16xf32>
    tpu.vector_store %arg11[%c1, %c0_47], %164 {strides = array<i32>} : memref<2x48xf32, #tpu.memory_space<vmem>>, vector<1x16xf32>,
    %166 = arith.subf %140, %145 : vector<1x16xf32>
    %167 = arith.mulf %166, %158 : vector<1x16xf32>
    %168 = vector.extract_strided_slice %78 {offsets = [0, 16], sizes = [1, 16], strides = [1, 1]} : vector<1x48xf32> to vector<1x16xf32>
    %169 = arith.mulf %168, %167 : vector<1x16xf32>
    %170 = vector.extract_strided_slice %79 {offsets = [0, 16], sizes = [1, 16], strides = [1, 1]} : vector<1x48xf32> to vector<1x16xf32>
    %171 = arith.addf %169, %170 : vector<1x16xf32>
    %c1_48 = arith.constant 1 : index
    %c16_49 = arith.constant 16 : index
    %172 = vector.load %arg11[%c1_48, %c16_49] : memref<2x48xf32, #tpu.memory_space<vmem>>, vector<1x16xf32>
    tpu.vector_store %arg11[%c1_48, %c16_49], %171 {strides = array<i32>} : memref<2x48xf32, #tpu.memory_space<vmem>>, vector<1x16xf32>,
    %173 = arith.subf %141, %145 : vector<1x16xf32>
    %174 = arith.mulf %173, %158 : vector<1x16xf32>
    %175 = vector.extract_strided_slice %78 {offsets = [0, 32], sizes = [1, 16], strides = [1, 1]} : vector<1x48xf32> to vector<1x16xf32>
    %176 = arith.mulf %175, %174 : vector<1x16xf32>
    %177 = vector.extract_strided_slice %79 {offsets = [0, 32], sizes = [1, 16], strides = [1, 1]} : vector<1x48xf32> to vector<1x16xf32>
    %178 = arith.addf %176, %177 : vector<1x16xf32>
    %c1_50 = arith.constant 1 : index
    %c32_51 = arith.constant 32 : index
    %179 = vector.load %arg11[%c1_50, %c32_51] : memref<2x48xf32, #tpu.memory_space<vmem>>, vector<1x16xf32>
    tpu.vector_store %arg11[%c1_50, %c32_51], %178 {strides = array<i32>} : memref<2x48xf32, #tpu.memory_space<vmem>>, vector<1x16xf32>,
    return
  }
}

</mosaic_0001>

<llo_original>
// kernel: tpu_custom_call.1
$region0: #{tpu_custom_call.1}
  #allocation0 [shape = 'u32[]', space=smem, size = 0x4, offset = 0x4, fixed_abs, tag = 'smem constant byte address 0x4 - core index']
  #allocation1 [shape = 'u32[144,128]{1,0:T(1,128)}', space=vmem, size = 0x12000, scoped, tag = 'internal scratch']
  %s0 = inlined_call_operand.vmem [shape: f32[3,512], index: 0, kind: input, shape index: {}]
  %s1 = inlined_call_operand.vmem [shape: f32[96,3], index: 1, kind: input, shape index: {}]
  %s2 = inlined_call_operand.vmem [shape: f32[96,1], index: 2, kind: input, shape index: {}]
  %s3 = inlined_call_operand.vmem [shape: f32[3,32], index: 3, kind: input, shape index: {}]
  %s4 = inlined_call_operand.vmem [shape: f32[3,1], index: 4, kind: input, shape index: {}]
  %s5 = inlined_call_operand.vmem [shape: f32[256,48], index: 5, kind: input, shape index: {}]
  %s6 = inlined_call_operand.vmem [shape: f32[256,48], index: 6, kind: input, shape index: {}]
  %s7 = inlined_call_operand.vmem [shape: f32[256,48], index: 7, kind: input, shape index: {}]
  %s8 = inlined_call_operand.vmem [shape: f32[1,48], index: 8, kind: input, shape index: {}]
  %s9 = inlined_call_operand.vmem [shape: f32[1,48], index: 9, kind: input, shape index: {}]
  %s10 = inlined_call_operand.vmem [shape: f32[1,48], index: 10, kind: input, shape index: {}]
  %s11 = inlined_call_operand.hbm [shape: f32[2,48], index: 11, kind: output, shape index: {}]
  %s12 = sld [smem:[#allocation0]]
  $region54: #{tpu_custom_call.1} parent=0
    _
  %s14 = ssub.s32 1, %s12
  %s15 = scalar_select 0, %s14, %s12
  $region1: #{tpu_custom_call.1} parent=0
    #allocation2 [shape = 'u8[1024]{0}', space=vmem, size = 0x400, scoped, tag = 'output window, operand 0, single buffered']
    #allocation3 [shape = 's32[1]{0}', space=sflag, size = 0x4, scoped, tag = 'scoped memory for tpu_custom_call.1']
    %16 = vsyncpa [#allocation3], 0
    // Predicated region
    $region2: #{tpu_custom_call.1} parent=1 // pred_check
      _
    $region3: #{tpu_custom_call.1} parent=1 // pred_check_branch
      %18 = sbr.rel (0) target = $region5
    $region4: #{tpu_custom_call.1} parent=1 // pred_region
      _
    $region5: #{tpu_custom_call.1} parent=1 // pred_fallthru
      _
    // Predicated region
    $region6: #{tpu_custom_call.1} parent=1 // pred_check
      _
    $region7: #{tpu_custom_call.1} parent=1 // pred_check_branch
      %20 = sbr.rel (0) target = $region9
    $region8: #{tpu_custom_call.1} parent=1 // pred_region
      _
    $region9: #{tpu_custom_call.1} parent=1 // pred_fallthru
      _
    // Predicated region
    $region10: #{tpu_custom_call.1} parent=1 // pred_check
      _
    $region11: #{tpu_custom_call.1} parent=1 // pred_check_branch
      %22 = sbr.rel (0) target = $region13
    $region12: #{tpu_custom_call.1} parent=1 // pred_region
      _
    $region13: #{tpu_custom_call.1} parent=1 // pred_fallthru
      _
    // Predicated region
    $region14: #{tpu_custom_call.1} parent=1 // pred_check
      _
    $region15: #{tpu_custom_call.1} parent=1 // pred_check_branch
      %24 = sbr.rel (0) target = $region17
    $region16: #{tpu_custom_call.1} parent=1 // pred_region
      _
    $region17: #{tpu_custom_call.1} parent=1 // pred_fallthru
      _
    // Predicated region
    $region18: #{tpu_custom_call.1} parent=1 // pred_check
      _
    $region19: #{tpu_custom_call.1} parent=1 // pred_check_branch
      %26 = sbr.rel (0) target = $region21
    $region20: #{tpu_custom_call.1} parent=1 // pred_region
      _
    $region21: #{tpu_custom_call.1} parent=1 // pred_fallthru
      _
    // Predicated region
    $region22: #{tpu_custom_call.1} parent=1 // pred_check
      _
    $region23: #{tpu_custom_call.1} parent=1 // pred_check_branch
      %28 = sbr.rel (0) target = $region25
    $region24: #{tpu_custom_call.1} parent=1 // pred_region
      _
    $region25: #{tpu_custom_call.1} parent=1 // pred_fallthru
      _
    // Predicated region
    $region26: #{tpu_custom_call.1} parent=1 // pred_check
      _
    $region27: #{tpu_custom_call.1} parent=1 // pred_check_branch
      %30 = sbr.rel (0) target = $region29
    $region28: #{tpu_custom_call.1} parent=1 // pred_region
      _
    $region29: #{tpu_custom_call.1} parent=1 // pred_fallthru
      _
    // Predicated region
    $region30: #{tpu_custom_call.1} parent=1 // pred_check
      _
    $region31: #{tpu_custom_call.1} parent=1 // pred_check_branch
      %32 = sbr.rel (0) target = $region33
    $region32: #{tpu_custom_call.1} parent=1 // pred_region
      _
    $region33: #{tpu_custom_call.1} parent=1 // pred_fallthru
      _
    // Predicated region
    $region34: #{tpu_custom_call.1} parent=1 // pred_check
      _
    $region35: #{tpu_custom_call.1} parent=1 // pred_check_branch
      %34 = sbr.rel (0) target = $region37
    $region36: #{tpu_custom_call.1} parent=1 // pred_region
      _
    $region37: #{tpu_custom_call.1} parent=1 // pred_fallthru
      _
    // Predicated region
    $region38: #{tpu_custom_call.1} parent=1 // pred_check
      _
    $region39: #{tpu_custom_call.1} parent=1 // pred_check_branch
      %36 = sbr.rel (0) target = $region41
    $region40: #{tpu_custom_call.1} parent=1 // pred_region
      _
    $region41: #{tpu_custom_call.1} parent=1 // pred_fallthru
      _
    // Predicated region
    $region42: #{tpu_custom_call.1} parent=1 // pred_check
      _
    $region43: #{tpu_custom_call.1} parent=1 // pred_check_branch
      %38 = sbr.rel (0) target = $region45
    $region44: #{tpu_custom_call.1} parent=1 // pred_region
      _
    $region45: #{tpu_custom_call.1} parent=1 // pred_fallthru
      _
    %v39 = vld [vmem:[%s0] sm:$0x77]
    %v40 = vld [vmem:[%s0 + $0x8] sm:$0x77]
    %v41 = vld [vmem:[%s1] sm:$0xff]
    %v42 = vld [vmem:[%s1 + $0x8] sm:$0xff]
    %v43 = vld [vmem:[%s1 + $0x10] sm:$0xff]
    %v44 = vld [vmem:[%s1 + $0x18] sm:$0xff]
    %v45 = vld [vmem:[%s1 + $0x20] sm:$0xff]
    %v46 = vld [vmem:[%s1 + $0x28] sm:$0xff]
    %v47 = vld [vmem:[%s1 + $0x30] sm:$0xff]
    %v48 = vld [vmem:[%s1 + $0x38] sm:$0xff]
    %v49 = vld [vmem:[%s1 + $0x40] sm:$0xff]
    %v50 = vld [vmem:[%s1 + $0x48] sm:$0xff]
    %v51 = vld [vmem:[%s1 + $0x50] sm:$0xff]
    %v52 = vld [vmem:[%s1 + $0x58] sm:$0xff]
    %54 = vset.pattern.permute.xlu0 0
    %55 = vperm.xlu0 %54, %v41
    %v56 = vpop.permute.xlu0 %55
    %59 = vset.pattern.permute.xlu0 0
    %60 = vperm.xlu0 %59, %v42
    %v61 = vpop.permute.xlu0 %60
    %64 = vset.pattern.permute.xlu0 0
    %65 = vperm.xlu0 %64, %v43
    %v66 = vpop.permute.xlu0 %65
    %69 = vset.pattern.permute.xlu0 0
    %70 = vperm.xlu0 %69, %v44
    %v71 = vpop.permute.xlu0 %70
    %74 = vset.pattern.permute.xlu0 0
    %75 = vperm.xlu0 %74, %v45
    %v76 = vpop.permute.xlu0 %75
    %79 = vset.pattern.permute.xlu0 0
    %80 = vperm.xlu0 %79, %v46
    %v81 = vpop.permute.xlu0 %80
    %84 = vset.pattern.permute.xlu0 0
    %85 = vperm.xlu0 %84, %v47
    %v86 = vpop.permute.xlu0 %85
    %89 = vset.pattern.permute.xlu0 0
    %90 = vperm.xlu0 %89, %v48
    %v91 = vpop.permute.xlu0 %90
    %94 = vset.pattern.permute.xlu0 0
    %95 = vperm.xlu0 %94, %v49
    %v96 = vpop.permute.xlu0 %95
    %99 = vset.pattern.permute.xlu0 0
    %100 = vperm.xlu0 %99, %v50
    %v101 = vpop.permute.xlu0 %100
    %104 = vset.pattern.permute.xlu0 0
    %105 = vperm.xlu0 %104, %v51
    %v106 = vpop.permute.xlu0 %105
    %109 = vset.pattern.permute.xlu0 0
    %110 = vperm.xlu0 %109, %v52
    %v111 = vpop.permute.xlu0 %110
    %v115 = vlaneseq
    %v116 = vshrl.u32 %v115, 7
    %v117 = vsub.s32 0, %v116
    %v118 = vrot.slane %v39, %v117
    %v119 = vlaneseq
    %v120 = vshrl.u32 %v119, 7
    %v121 = vsub.s32 4, %v120
    %v122 = vrot.slane %v39, %v121
    %v123 = vlaneseq
    %v124 = vshrl.u32 %v123, 7
    %v125 = vsub.s32 0, %v124
    %v126 = vrot.slane %v40, %v125
    %v127 = vlaneseq
    %v128 = vshrl.u32 %v127, 7
    %v129 = vsub.s32 4, %v128
    %v130 = vrot.slane %v40, %v129
    %v135 = vlaneseq
    %v136 = vshrl.u32 %v135, 7
    %v137 = vsub.s32 0, %v136
    %v138 = vrot.slane %v118, %v137
    %v139 = vlaneseq
    %v140 = vshrl.u32 %v139, 7
    %v141 = vsub.s32 0, %v140
    %v142 = vrot.slane %v122, %v141
    %v143 = vlaneseq
    %v144 = vshrl.u32 %v143, 7
    %v145 = vsub.s32 0, %v144
    %v146 = vrot.slane %v126, %v145
    %v147 = vlaneseq
    %v148 = vshrl.u32 %v147, 7
    %v149 = vsub.s32 0, %v148
    %v150 = vrot.slane %v130, %v149
    %v151 = vmul.f32 %v56, %v138
    %v152 = vmul.f32 %v56, %v142
    %v153 = vmul.f32 %v56, %v146
    %v154 = vmul.f32 %v56, %v150
    %v155 = vmul.f32 %v61, %v138
    %v156 = vmul.f32 %v61, %v142
    %v157 = vmul.f32 %v61, %v146
    %v158 = vmul.f32 %v61, %v150
    %v159 = vmul.f32 %v66, %v138
    %v160 = vmul.f32 %v66, %v142
    %v161 = vmul.f32 %v66, %v146
    %v162 = vmul.f32 %v66, %v150
    %v163 = vmul.f32 %v71, %v138
    %v164 = vmul.f32 %v71, %v142
    %v165 = vmul.f32 %v71, %v146
    %v166 = vmul.f32 %v71, %v150
    %v167 = vmul.f32 %v76, %v138
    %v168 = vmul.f32 %v76, %v142
    %v169 = vmul.f32 %v76, %v146
    %v170 = vmul.f32 %v76, %v150
    %v171 = vmul.f32 %v81, %v138
    %v172 = vmul.f32 %v81, %v142
    %v173 = vmul.f32 %v81, %v146
    %v174 = vmul.f32 %v81, %v150
    %v175 = vmul.f32 %v86, %v138
    %v176 = vmul.f32 %v86, %v142
    %v177 = vmul.f32 %v86, %v146
    %v178 = vmul.f32 %v86, %v150
    %v179 = vmul.f32 %v91, %v138
    %v180 = vmul.f32 %v91, %v142
    %v181 = vmul.f32 %v91, %v146
    %v182 = vmul.f32 %v91, %v150
    %v183 = vmul.f32 %v96, %v138
    %v184 = vmul.f32 %v96, %v142
    %v185 = vmul.f32 %v96, %v146
    %v186 = vmul.f32 %v96, %v150
    %v187 = vmul.f32 %v101, %v138
    %v188 = vmul.f32 %v101, %v142
    %v189 = vmul.f32 %v101, %v146
    %v190 = vmul.f32 %v101, %v150
    %v191 = vmul.f32 %v106, %v138
    %v192 = vmul.f32 %v106, %v142
    %v193 = vmul.f32 %v106, %v146
    %v194 = vmul.f32 %v106, %v150
    %v195 = vmul.f32 %v111, %v138
    %v196 = vmul.f32 %v111, %v142
    %v197 = vmul.f32 %v111, %v146
    %v198 = vmul.f32 %v111, %v150
    %199 = vset.pattern.permute.xlu0 1
    %200 = vperm.xlu0 %199, %v41
    %v201 = vpop.permute.xlu0 %200
    %203 = vset.pattern.permute.xlu0 1
    %204 = vperm.xlu0 %203, %v42
    %v205 = vpop.permute.xlu0 %204
    %207 = vset.pattern.permute.xlu0 1
    %208 = vperm.xlu0 %207, %v43
    %v209 = vpop.permute.xlu0 %208
    %211 = vset.pattern.permute.xlu0 1
    %212 = vperm.xlu0 %211, %v44
    %v213 = vpop.permute.xlu0 %212
    %215 = vset.pattern.permute.xlu0 1
    %216 = vperm.xlu0 %215, %v45
    %v217 = vpop.permute.xlu0 %216
    %219 = vset.pattern.permute.xlu0 1
    %220 = vperm.xlu0 %219, %v46
    %v221 = vpop.permute.xlu0 %220
    %223 = vset.pattern.permute.xlu0 1
    %224 = vperm.xlu0 %223, %v47
    %v225 = vpop.permute.xlu0 %224
    %227 = vset.pattern.permute.xlu0 1
    %228 = vperm.xlu0 %227, %v48
    %v229 = vpop.permute.xlu0 %228
    %231 = vset.pattern.permute.xlu0 1
    %232 = vperm.xlu0 %231, %v49
    %v233 = vpop.permute.xlu0 %232
    %235 = vset.pattern.permute.xlu0 1
    %236 = vperm.xlu0 %235, %v50
    %v237 = vpop.permute.xlu0 %236
    %239 = vset.pattern.permute.xlu0 1
    %240 = vperm.xlu0 %239, %v51
    %v241 = vpop.permute.xlu0 %240
    %243 = vset.pattern.permute.xlu0 1
    %244 = vperm.xlu0 %243, %v52
    %v245 = vpop.permute.xlu0 %244
    %v247 = vlaneseq
    %v248 = vshrl.u32 %v247, 7
    %v249 = vsub.s32 1, %v248
    %v250 = vrot.slane %v39, %v249
    %v251 = vlaneseq
    %v252 = vshrl.u32 %v251, 7
    %v253 = vsub.s32 5, %v252
    %v254 = vrot.slane %v39, %v253
    %v255 = vlaneseq
    %v256 = vshrl.u32 %v255, 7
    %v257 = vsub.s32 1, %v256
    %v258 = vrot.slane %v40, %v257
    %v259 = vlaneseq
    %v260 = vshrl.u32 %v259, 7
    %v261 = vsub.s32 5, %v260
    %v262 = vrot.slane %v40, %v261
    %v267 = vlaneseq
    %v268 = vshrl.u32 %v267, 7
    %v269 = vsub.s32 1, %v268
    %v270 = vrot.slane %v250, %v269
    %v271 = vlaneseq
    %v272 = vshrl.u32 %v271, 7
    %v273 = vsub.s32 1, %v272
    %v274 = vrot.slane %v254, %v273
    %v275 = vlaneseq
    %v276 = vshrl.u32 %v275, 7
    %v277 = vsub.s32 1, %v276
    %v278 = vrot.slane %v258, %v277
    %v279 = vlaneseq
    %v280 = vshrl.u32 %v279, 7
    %v281 = vsub.s32 1, %v280
    %v282 = vrot.slane %v262, %v281
    %v283 = vmul.f32 %v201, %v270
    %v284 = vmul.f32 %v201, %v274
    %v285 = vmul.f32 %v201, %v278
    %v286 = vmul.f32 %v201, %v282
    %v287 = vmul.f32 %v205, %v270
    %v288 = vmul.f32 %v205, %v274
    %v289 = vmul.f32 %v205, %v278
    %v290 = vmul.f32 %v205, %v282
    %v291 = vmul.f32 %v209, %v270
    %v292 = vmul.f32 %v209, %v274
    %v293 = vmul.f32 %v209, %v278
    %v294 = vmul.f32 %v209, %v282
    %v295 = vmul.f32 %v213, %v270
    %v296 = vmul.f32 %v213, %v274
    %v297 = vmul.f32 %v213, %v278
    %v298 = vmul.f32 %v213, %v282
    %v299 = vmul.f32 %v217, %v270
    %v300 = vmul.f32 %v217, %v274
    %v301 = vmul.f32 %v217, %v278
    %v302 = vmul.f32 %v217, %v282
    %v303 = vmul.f32 %v221, %v270
    %v304 = vmul.f32 %v221, %v274
    %v305 = vmul.f32 %v221, %v278
    %v306 = vmul.f32 %v221, %v282
    %v307 = vmul.f32 %v225, %v270
    %v308 = vmul.f32 %v225, %v274
    %v309 = vmul.f32 %v225, %v278
    %v310 = vmul.f32 %v225, %v282
    %v311 = vmul.f32 %v229, %v270
    %v312 = vmul.f32 %v229, %v274
    %v313 = vmul.f32 %v229, %v278
    %v314 = vmul.f32 %v229, %v282
    %v315 = vmul.f32 %v233, %v270
    %v316 = vmul.f32 %v233, %v274
    %v317 = vmul.f32 %v233, %v278
    %v318 = vmul.f32 %v233, %v282
    %v319 = vmul.f32 %v237, %v270
    %v320 = vmul.f32 %v237, %v274
    %v321 = vmul.f32 %v237, %v278
    %v322 = vmul.f32 %v237, %v282
    %v323 = vmul.f32 %v241, %v270
    %v324 = vmul.f32 %v241, %v274
    %v325 = vmul.f32 %v241, %v278
    %v326 = vmul.f32 %v241, %v282
    %v327 = vmul.f32 %v245, %v270
    %v328 = vmul.f32 %v245, %v274
    %v329 = vmul.f32 %v245, %v278
    %v330 = vmul.f32 %v245, %v282
    %v331 = vadd.f32 %v151, %v283
    %v332 = vadd.f32 %v152, %v284
    %v333 = vadd.f32 %v153, %v285
    %v334 = vadd.f32 %v154, %v286
    %v335 = vadd.f32 %v155, %v287
    %v336 = vadd.f32 %v156, %v288
    %v337 = vadd.f32 %v157, %v289
    %v338 = vadd.f32 %v158, %v290
    %v339 = vadd.f32 %v159, %v291
    %v340 = vadd.f32 %v160, %v292
    %v341 = vadd.f32 %v161, %v293
    %v342 = vadd.f32 %v162, %v294
    %v343 = vadd.f32 %v163, %v295
    %v344 = vadd.f32 %v164, %v296
    %v345 = vadd.f32 %v165, %v297
    %v346 = vadd.f32 %v166, %v298
    %v347 = vadd.f32 %v167, %v299
    %v348 = vadd.f32 %v168, %v300
    %v349 = vadd.f32 %v169, %v301
    %v350 = vadd.f32 %v170, %v302
    %v351 = vadd.f32 %v171, %v303
    %v352 = vadd.f32 %v172, %v304
    %v353 = vadd.f32 %v173, %v305
    %v354 = vadd.f32 %v174, %v306
    %v355 = vadd.f32 %v175, %v307
    %v356 = vadd.f32 %v176, %v308
    %v357 = vadd.f32 %v177, %v309
    %v358 = vadd.f32 %v178, %v310
    %v359 = vadd.f32 %v179, %v311
    %v360 = vadd.f32 %v180, %v312
    %v361 = vadd.f32 %v181, %v313
    %v362 = vadd.f32 %v182, %v314
    %v363 = vadd.f32 %v183, %v315
    %v364 = vadd.f32 %v184, %v316
    %v365 = vadd.f32 %v185, %v317
    %v366 = vadd.f32 %v186, %v318
    %v367 = vadd.f32 %v187, %v319
    %v368 = vadd.f32 %v188, %v320
    %v369 = vadd.f32 %v189, %v321
    %v370 = vadd.f32 %v190, %v322
    %v371 = vadd.f32 %v191, %v323
    %v372 = vadd.f32 %v192, %v324
    %v373 = vadd.f32 %v193, %v325
    %v374 = vadd.f32 %v194, %v326
    %v375 = vadd.f32 %v195, %v327
    %v376 = vadd.f32 %v196, %v328
    %v377 = vadd.f32 %v197, %v329
    %v378 = vadd.f32 %v198, %v330
    %379 = vset.pattern.permute.xlu0 2
    %380 = vperm.xlu0 %379, %v41
    %v381 = vpop.permute.xlu0 %380
    %383 = vset.pattern.permute.xlu0 2
    %384 = vperm.xlu0 %383, %v42
    %v385 = vpop.permute.xlu0 %384
    %387 = vset.pattern.permute.xlu0 2
    %388 = vperm.xlu0 %387, %v43
    %v389 = vpop.permute.xlu0 %388
    %391 = vset.pattern.permute.xlu0 2
    %392 = vperm.xlu0 %391, %v44
    %v393 = vpop.permute.xlu0 %392
    %395 = vset.pattern.permute.xlu0 2
    %396 = vperm.xlu0 %395, %v45
    %v397 = vpop.permute.xlu0 %396
    %399 = vset.pattern.permute.xlu0 2
    %400 = vperm.xlu0 %399, %v46
    %v401 = vpop.permute.xlu0 %400
    %403 = vset.pattern.permute.xlu0 2
    %404 = vperm.xlu0 %403, %v47
    %v405 = vpop.permute.xlu0 %404
    %407 = vset.pattern.permute.xlu0 2
    %408 = vperm.xlu0 %407, %v48
    %v409 = vpop.permute.xlu0 %408
    %411 = vset.pattern.permute.xlu0 2
    %412 = vperm.xlu0 %411, %v49
    %v413 = vpop.permute.xlu0 %412
    %415 = vset.pattern.permute.xlu0 2
    %416 = vperm.xlu0 %415, %v50
    %v417 = vpop.permute.xlu0 %416
    %419 = vset.pattern.permute.xlu0 2
    %420 = vperm.xlu0 %419, %v51
    %v421 = vpop.permute.xlu0 %420
    %423 = vset.pattern.permute.xlu0 2
    %424 = vperm.xlu0 %423, %v52
    %v425 = vpop.permute.xlu0 %424
    %v427 = vlaneseq
    %v428 = vshrl.u32 %v427, 7
    %v429 = vsub.s32 2, %v428
    %v430 = vrot.slane %v39, %v429
    %v431 = vlaneseq
    %v432 = vshrl.u32 %v431, 7
    %v433 = vsub.s32 6, %v432
    %v434 = vrot.slane %v39, %v433
    %v435 = vlaneseq
    %v436 = vshrl.u32 %v435, 7
    %v437 = vsub.s32 2, %v436
    %v438 = vrot.slane %v40, %v437
    %v439 = vlaneseq
    %v440 = vshrl.u32 %v439, 7
    %v441 = vsub.s32 6, %v440
    %v442 = vrot.slane %v40, %v441
    %v447 = vlaneseq
    %v448 = vshrl.u32 %v447, 7
    %v449 = vsub.s32 2, %v448
    %v450 = vrot.slane %v430, %v449
    %v451 = vlaneseq
    %v452 = vshrl.u32 %v451, 7
    %v453 = vsub.s32 2, %v452
    %v454 = vrot.slane %v434, %v453
    %v455 = vlaneseq
    %v456 = vshrl.u32 %v455, 7
    %v457 = vsub.s32 2, %v456
    %v458 = vrot.slane %v438, %v457
    %v459 = vlaneseq
    %v460 = vshrl.u32 %v459, 7
    %v461 = vsub.s32 2, %v460
    %v462 = vrot.slane %v442, %v461
    %v463 = vmul.f32 %v381, %v450
    %v464 = vmul.f32 %v381, %v454
    %v465 = vmul.f32 %v381, %v458
    %v466 = vmul.f32 %v381, %v462
    %v467 = vmul.f32 %v385, %v450
    %v468 = vmul.f32 %v385, %v454
    %v469 = vmul.f32 %v385, %v458
    %v470 = vmul.f32 %v385, %v462
    %v471 = vmul.f32 %v389, %v450
    %v472 = vmul.f32 %v389, %v454
    %v473 = vmul.f32 %v389, %v458
    %v474 = vmul.f32 %v389, %v462
    %v475 = vmul.f32 %v393, %v450
    %v476 = vmul.f32 %v393, %v454
    %v477 = vmul.f32 %v393, %v458
    %v478 = vmul.f32 %v393, %v462
    %v479 = vmul.f32 %v397, %v450
    %v480 = vmul.f32 %v397, %v454
    %v481 = vmul.f32 %v397, %v458
    %v482 = vmul.f32 %v397, %v462
    %v483 = vmul.f32 %v401, %v450
    %v484 = vmul.f32 %v401, %v454
    %v485 = vmul.f32 %v401, %v458
    %v486 = vmul.f32 %v401, %v462
    %v487 = vmul.f32 %v405, %v450
    %v488 = vmul.f32 %v405, %v454
    %v489 = vmul.f32 %v405, %v458
    %v490 = vmul.f32 %v405, %v462
    %v491 = vmul.f32 %v409, %v450
    %v492 = vmul.f32 %v409, %v454
    %v493 = vmul.f32 %v409, %v458
    %v494 = vmul.f32 %v409, %v462
    %v495 = vmul.f32 %v413, %v450
    %v496 = vmul.f32 %v413, %v454
    %v497 = vmul.f32 %v413, %v458
    %v498 = vmul.f32 %v413, %v462
    %v499 = vmul.f32 %v417, %v450
    %v500 = vmul.f32 %v417, %v454
    %v501 = vmul.f32 %v417, %v458
    %v502 = vmul.f32 %v417, %v462
    %v503 = vmul.f32 %v421, %v450
    %v504 = vmul.f32 %v421, %v454
    %v505 = vmul.f32 %v421, %v458
    %v506 = vmul.f32 %v421, %v462
    %v507 = vmul.f32 %v425, %v450
    %v508 = vmul.f32 %v425, %v454
    %v509 = vmul.f32 %v425, %v458
    %v510 = vmul.f32 %v425, %v462
    %v511 = vadd.f32 %v331, %v463
    %v512 = vadd.f32 %v332, %v464
    %v513 = vadd.f32 %v333, %v465
    %v514 = vadd.f32 %v334, %v466
    %v515 = vadd.f32 %v335, %v467
    %v516 = vadd.f32 %v336, %v468
    %v517 = vadd.f32 %v337, %v469
    %v518 = vadd.f32 %v338, %v470
    %v519 = vadd.f32 %v339, %v471
    %v520 = vadd.f32 %v340, %v472
    %v521 = vadd.f32 %v341, %v473
    %v522 = vadd.f32 %v342, %v474
    %v523 = vadd.f32 %v343, %v475
    %v524 = vadd.f32 %v344, %v476
    %v525 = vadd.f32 %v345, %v477
    %v526 = vadd.f32 %v346, %v478
    %v527 = vadd.f32 %v347, %v479
    %v528 = vadd.f32 %v348, %v480
    %v529 = vadd.f32 %v349, %v481
    %v530 = vadd.f32 %v350, %v482
    %v531 = vadd.f32 %v351, %v483
    %v532 = vadd.f32 %v352, %v484
    %v533 = vadd.f32 %v353, %v485
    %v534 = vadd.f32 %v354, %v486
    %v535 = vadd.f32 %v355, %v487
    %v536 = vadd.f32 %v356, %v488
    %v537 = vadd.f32 %v357, %v489
    %v538 = vadd.f32 %v358, %v490
    %v539 = vadd.f32 %v359, %v491
    %v540 = vadd.f32 %v360, %v492
    %v541 = vadd.f32 %v361, %v493
    %v542 = vadd.f32 %v362, %v494
    %v543 = vadd.f32 %v363, %v495
    %v544 = vadd.f32 %v364, %v496
    %v545 = vadd.f32 %v365, %v497
    %v546 = vadd.f32 %v366, %v498
    %v547 = vadd.f32 %v367, %v499
    %v548 = vadd.f32 %v368, %v500
    %v549 = vadd.f32 %v369, %v501
    %v550 = vadd.f32 %v370, %v502
    %v551 = vadd.f32 %v371, %v503
    %v552 = vadd.f32 %v372, %v504
    %v553 = vadd.f32 %v373, %v505
    %v554 = vadd.f32 %v374, %v506
    %v555 = vadd.f32 %v375, %v507
    %v556 = vadd.f32 %v376, %v508
    %v557 = vadd.f32 %v377, %v509
    %v558 = vadd.f32 %v378, %v510
    %v559 = vld [vmem:[%s2] sm:$0xff]
    %v560 = vld [vmem:[%s2 + $0x8] sm:$0xff]
    %v561 = vld [vmem:[%s2 + $0x10] sm:$0xff]
    %v562 = vld [vmem:[%s2 + $0x18] sm:$0xff]
    %v563 = vld [vmem:[%s2 + $0x20] sm:$0xff]
    %v564 = vld [vmem:[%s2 + $0x28] sm:$0xff]
    %v565 = vld [vmem:[%s2 + $0x30] sm:$0xff]
    %v566 = vld [vmem:[%s2 + $0x38] sm:$0xff]
    %v567 = vld [vmem:[%s2 + $0x40] sm:$0xff]
    %v568 = vld [vmem:[%s2 + $0x48] sm:$0xff]
    %v569 = vld [vmem:[%s2 + $0x50] sm:$0xff]
    %v570 = vld [vmem:[%s2 + $0x58] sm:$0xff]
    %572 = vset.pattern.permute.xlu0 0
    %573 = vperm.xlu0 %572, %v559
    %v574 = vpop.permute.xlu0 %573
    %577 = vset.pattern.permute.xlu0 0
    %578 = vperm.xlu0 %577, %v560
    %v579 = vpop.permute.xlu0 %578
    %582 = vset.pattern.permute.xlu0 0
    %583 = vperm.xlu0 %582, %v561
    %v584 = vpop.permute.xlu0 %583
    %587 = vset.pattern.permute.xlu0 0
    %588 = vperm.xlu0 %587, %v562
    %v589 = vpop.permute.xlu0 %588
    %592 = vset.pattern.permute.xlu0 0
    %593 = vperm.xlu0 %592, %v563
    %v594 = vpop.permute.xlu0 %593
    %597 = vset.pattern.permute.xlu0 0
    %598 = vperm.xlu0 %597, %v564
    %v599 = vpop.permute.xlu0 %598
    %602 = vset.pattern.permute.xlu0 0
    %603 = vperm.xlu0 %602, %v565
    %v604 = vpop.permute.xlu0 %603
    %607 = vset.pattern.permute.xlu0 0
    %608 = vperm.xlu0 %607, %v566
    %v609 = vpop.permute.xlu0 %608
    %612 = vset.pattern.permute.xlu0 0
    %613 = vperm.xlu0 %612, %v567
    %v614 = vpop.permute.xlu0 %613
    %617 = vset.pattern.permute.xlu0 0
    %618 = vperm.xlu0 %617, %v568
    %v619 = vpop.permute.xlu0 %618
    %622 = vset.pattern.permute.xlu0 0
    %623 = vperm.xlu0 %622, %v569
    %v624 = vpop.permute.xlu0 %623
    %627 = vset.pattern.permute.xlu0 0
    %628 = vperm.xlu0 %627, %v570
    %v629 = vpop.permute.xlu0 %628
    %v631 = vadd.f32 %v511, %v574
    %v632 = vadd.f32 %v512, %v574
    %v633 = vadd.f32 %v513, %v574
    %v634 = vadd.f32 %v514, %v574
    %v635 = vadd.f32 %v515, %v579
    %v636 = vadd.f32 %v516, %v579
    %v637 = vadd.f32 %v517, %v579
    %v638 = vadd.f32 %v518, %v579
    %v639 = vadd.f32 %v519, %v584
    %v640 = vadd.f32 %v520, %v584
    %v641 = vadd.f32 %v521, %v584
    %v642 = vadd.f32 %v522, %v584
    %v643 = vadd.f32 %v523, %v589
    %v644 = vadd.f32 %v524, %v589
    %v645 = vadd.f32 %v525, %v589
    %v646 = vadd.f32 %v526, %v589
    %v647 = vadd.f32 %v527, %v594
    %v648 = vadd.f32 %v528, %v594
    %v649 = vadd.f32 %v529, %v594
    %v650 = vadd.f32 %v530, %v594
    %v651 = vadd.f32 %v531, %v599
    %v652 = vadd.f32 %v532, %v599
    %v653 = vadd.f32 %v533, %v599
    %v654 = vadd.f32 %v534, %v599
    %v655 = vadd.f32 %v535, %v604
    %v656 = vadd.f32 %v536, %v604
    %v657 = vadd.f32 %v537, %v604
    %v658 = vadd.f32 %v538, %v604
    %v659 = vadd.f32 %v539, %v609
    %v660 = vadd.f32 %v540, %v609
    %v661 = vadd.f32 %v541, %v609
    %v662 = vadd.f32 %v542, %v609
    %v663 = vadd.f32 %v543, %v614
    %v664 = vadd.f32 %v544, %v614
    %v665 = vadd.f32 %v545, %v614
    %v666 = vadd.f32 %v546, %v614
    %v667 = vadd.f32 %v547, %v619
    %v668 = vadd.f32 %v548, %v619
    %v669 = vadd.f32 %v549, %v619
    %v670 = vadd.f32 %v550, %v619
    %v671 = vadd.f32 %v551, %v624
    %v672 = vadd.f32 %v552, %v624
    %v673 = vadd.f32 %v553, %v624
    %v674 = vadd.f32 %v554, %v624
    %v675 = vadd.f32 %v555, %v629
    %v676 = vadd.f32 %v556, %v629
    %v677 = vadd.f32 %v557, %v629
    %v678 = vadd.f32 %v558, %v629
    %v679 = vmax.f32 %v647, %v649
    %v680 = vmax.f32 %v648, %v650
    %v681 = vmax.f32 %v651, %v653
    %v682 = vmax.f32 %v652, %v654
    %v683 = vmax.f32 %v655, %v657
    %v684 = vmax.f32 %v656, %v658
    %v685 = vmax.f32 %v659, %v661
    %v686 = vmax.f32 %v660, %v662
    %v687 = vsub.f32 %v647, %v679
    %v688 = vsub.f32 %v648, %v680
    %v689 = vsub.f32 %v651, %v681
    %v690 = vsub.f32 %v652, %v682
    %v691 = vsub.f32 %v655, %v683
    %v692 = vsub.f32 %v656, %v684
    %v693 = vsub.f32 %v659, %v685
    %v694 = vsub.f32 %v660, %v686
    %v695 = vmul.f32 %v687, 1.442695
    %v696 = vpow.pop %v695
    %v697 = vmul.f32 %v688, 1.442695
    %v698 = vpow.pop %v697
    %v699 = vmul.f32 %v689, 1.442695
    %v700 = vpow.pop %v699
    %v701 = vmul.f32 %v690, 1.442695
    %v702 = vpow.pop %v701
    %v703 = vmul.f32 %v691, 1.442695
    %v704 = vpow.pop %v703
    %v705 = vmul.f32 %v692, 1.442695
    %v706 = vpow.pop %v705
    %v707 = vmul.f32 %v693, 1.442695
    %v708 = vpow.pop %v707
    %v709 = vmul.f32 %v694, 1.442695
    %v710 = vpow.pop %v709
    %v711 = vmul.f32 %v696, %v663
    %v712 = vmul.f32 %v698, %v664
    %v713 = vmul.f32 %v700, %v667
    %v714 = vmul.f32 %v702, %v668
    %v715 = vmul.f32 %v704, %v671
    %v716 = vmul.f32 %v706, %v672
    %v717 = vmul.f32 %v708, %v675
    %v718 = vmul.f32 %v710, %v676
    %v719 = vadd.f32 %v711, %v712
    %720 = vadd.xlane.f32.xlu0 %v719
    %v721 = vpop.xlane.xlu0 %720
    %v722 = vadd.f32 %v713, %v714
    %723 = vadd.xlane.f32.xlu0 %v722
    %v724 = vpop.xlane.xlu0 %723
    %v725 = vadd.f32 %v715, %v716
    %726 = vadd.xlane.f32.xlu0 %v725
    %v727 = vpop.xlane.xlu0 %726
    %v728 = vadd.f32 %v717, %v718
    %729 = vadd.xlane.f32.xlu0 %v728
    %v730 = vpop.xlane.xlu0 %729
    %v731 = vadd.f32 %v696, %v698
    %732 = vadd.xlane.f32.xlu0 %v731
    %v733 = vpop.xlane.xlu0 %732
    %v734 = vadd.f32 %v700, %v702
    %735 = vadd.xlane.f32.xlu0 %v734
    %v736 = vpop.xlane.xlu0 %735
    %v737 = vadd.f32 %v704, %v706
    %738 = vadd.xlane.f32.xlu0 %v737
    %v739 = vpop.xlane.xlu0 %738
    %v740 = vadd.f32 %v708, %v710
    %741 = vadd.xlane.f32.xlu0 %v740
    %v742 = vpop.xlane.xlu0 %741
    %v743 = vrcp.pop %v733
    %v744 = vmul.f32 %v721, %v743
    %v745 = vrcp.pop %v736
    %v746 = vmul.f32 %v724, %v745
    %v747 = vrcp.pop %v739
    %v748 = vmul.f32 %v727, %v747
    %v749 = vrcp.pop %v742
    %v750 = vmul.f32 %v730, %v749
    %v751 = vmul.f32 %v631, 0.5
    %v752 = vmul.f32 %v632, 0.5
    %v753 = vmul.f32 %v635, 0.5
    %v754 = vmul.f32 %v636, 0.5
    %v755 = vmul.f32 %v639, 0.5
    %v756 = vmul.f32 %v640, 0.5
    %v757 = vmul.f32 %v643, 0.5
    %v758 = vmul.f32 %v644, 0.5
    %v759 = vtanh.pop %v751
    %v760 = vtanh.pop %v752
    %v761 = vtanh.pop %v753
    %v762 = vtanh.pop %v754
    %v763 = vtanh.pop %v755
    %v764 = vtanh.pop %v756
    %v765 = vtanh.pop %v757
    %v766 = vtanh.pop %v758
    %v767 = vadd.f32 %v759, 1.0
    %v768 = vadd.f32 %v760, 1.0
    %v769 = vadd.f32 %v761, 1.0
    %v770 = vadd.f32 %v762, 1.0
    %v771 = vadd.f32 %v763, 1.0
    %v772 = vadd.f32 %v764, 1.0
    %v773 = vadd.f32 %v765, 1.0
    %v774 = vadd.f32 %v766, 1.0
    %v775 = vmul.f32 %v767, 0.5
    %v776 = vmul.f32 %v768, 0.5
    %v777 = vmul.f32 %v769, 0.5
    %v778 = vmul.f32 %v770, 0.5
    %v779 = vmul.f32 %v771, 0.5
    %v780 = vmul.f32 %v772, 0.5
    %v781 = vmul.f32 %v773, 0.5
    %v782 = vmul.f32 %v774, 0.5
    %v783 = vmul.f32 %v775, %v744
    %v784 = vmul.f32 %v776, %v744
    %v785 = vmul.f32 %v777, %v746
    %v786 = vmul.f32 %v778, %v746
    %v787 = vmul.f32 %v779, %v748
    %v788 = vmul.f32 %v780, %v748
    %v789 = vmul.f32 %v781, %v750
    %v790 = vmul.f32 %v782, %v750
    %v791 = vsub.f32 %v649, %v679
    %v792 = vsub.f32 %v650, %v680
    %v793 = vsub.f32 %v653, %v681
    %v794 = vsub.f32 %v654, %v682
    %v795 = vsub.f32 %v657, %v683
    %v796 = vsub.f32 %v658, %v684
    %v797 = vsub.f32 %v661, %v685
    %v798 = vsub.f32 %v662, %v686
    %v799 = vmul.f32 %v791, 1.442695
    %v800 = vpow.pop %v799
    %v801 = vmul.f32 %v792, 1.442695
    %v802 = vpow.pop %v801
    %v803 = vmul.f32 %v793, 1.442695
    %v804 = vpow.pop %v803
    %v805 = vmul.f32 %v794, 1.442695
    %v806 = vpow.pop %v805
    %v807 = vmul.f32 %v795, 1.442695
    %v808 = vpow.pop %v807
    %v809 = vmul.f32 %v796, 1.442695
    %v810 = vpow.pop %v809
    %v811 = vmul.f32 %v797, 1.442695
    %v812 = vpow.pop %v811
    %v813 = vmul.f32 %v798, 1.442695
    %v814 = vpow.pop %v813
    %v815 = vmul.f32 %v800, %v665
    %v816 = vmul.f32 %v802, %v666
    %v817 = vmul.f32 %v804, %v669
    %v818 = vmul.f32 %v806, %v670
    %v819 = vmul.f32 %v808, %v673
    %v820 = vmul.f32 %v810, %v674
    %v821 = vmul.f32 %v812, %v677
    %v822 = vmul.f32 %v814, %v678
    %v823 = vadd.f32 %v815, %v816
    %824 = vadd.xlane.f32.xlu0 %v823
    %v825 = vpop.xlane.xlu0 %824
    %v826 = vadd.f32 %v817, %v818
    %827 = vadd.xlane.f32.xlu0 %v826
    %v828 = vpop.xlane.xlu0 %827
    %v829 = vadd.f32 %v819, %v820
    %830 = vadd.xlane.f32.xlu0 %v829
    %v831 = vpop.xlane.xlu0 %830
    %v832 = vadd.f32 %v821, %v822
    %833 = vadd.xlane.f32.xlu0 %v832
    %v834 = vpop.xlane.xlu0 %833
    %v835 = vadd.f32 %v800, %v802
    %836 = vadd.xlane.f32.xlu0 %v835
    %v837 = vpop.xlane.xlu0 %836
    %v838 = vadd.f32 %v804, %v806
    %839 = vadd.xlane.f32.xlu0 %v838
    %v840 = vpop.xlane.xlu0 %839
    %v841 = vadd.f32 %v808, %v810
    %842 = vadd.xlane.f32.xlu0 %v841
    %v843 = vpop.xlane.xlu0 %842
    %v844 = vadd.f32 %v812, %v814
    %845 = vadd.xlane.f32.xlu0 %v844
    %v846 = vpop.xlane.xlu0 %845
    %v847 = vrcp.pop %v837
    %v848 = vmul.f32 %v825, %v847
    %v849 = vrcp.pop %v840
    %v850 = vmul.f32 %v828, %v849
    %v851 = vrcp.pop %v843
    %v852 = vmul.f32 %v831, %v851
    %v853 = vrcp.pop %v846
    %v854 = vmul.f32 %v834, %v853
    %v855 = vmul.f32 %v633, 0.5
    %v856 = vmul.f32 %v634, 0.5
    %v857 = vmul.f32 %v637, 0.5
    %v858 = vmul.f32 %v638, 0.5
    %v859 = vmul.f32 %v641, 0.5
    %v860 = vmul.f32 %v642, 0.5
    %v861 = vmul.f32 %v645, 0.5
    %v862 = vmul.f32 %v646, 0.5
    %v863 = vtanh.pop %v855
    %v864 = vtanh.pop %v856
    %v865 = vtanh.pop %v857
    %v866 = vtanh.pop %v858
    %v867 = vtanh.pop %v859
    %v868 = vtanh.pop %v860
    %v869 = vtanh.pop %v861
    %v870 = vtanh.pop %v862
    %v871 = vadd.f32 %v863, 1.0
    %v872 = vadd.f32 %v864, 1.0
    %v873 = vadd.f32 %v865, 1.0
    %v874 = vadd.f32 %v866, 1.0
    %v875 = vadd.f32 %v867, 1.0
    %v876 = vadd.f32 %v868, 1.0
    %v877 = vadd.f32 %v869, 1.0
    %v878 = vadd.f32 %v870, 1.0
    %v879 = vmul.f32 %v871, 0.5
    %v880 = vmul.f32 %v872, 0.5
    %v881 = vmul.f32 %v873, 0.5
    %v882 = vmul.f32 %v874, 0.5
    %v883 = vmul.f32 %v875, 0.5
    %v884 = vmul.f32 %v876, 0.5
    %v885 = vmul.f32 %v877, 0.5
    %v886 = vmul.f32 %v878, 0.5
    %v887 = vmul.f32 %v879, %v848
    %v888 = vmul.f32 %v880, %v848
    %v889 = vmul.f32 %v881, %v850
    %v890 = vmul.f32 %v882, %v850
    %v891 = vmul.f32 %v883, %v852
    %v892 = vmul.f32 %v884, %v852
    %v893 = vmul.f32 %v885, %v854
    %v894 = vmul.f32 %v886, %v854
    %v895 = vld [vmem:[%s3] sm:$0x7]
    %v896 = vld [vmem:[%s4] sm:$0x7]
    %898 = vset.pattern.permute.xlu0 0
    %899 = vperm.xlu0 %898, %v896
    %v900 = vpop.permute.xlu0 %899
    %vm902 = vcmask 261120
    %v904 = vsel %vm902, %v895, 0
    %906 = vmatprep.subr.mxu0 %v784
    %907 = vmatpush1.msra.mxu0 %v783
    %908 = vmatprep.subr.mxu0 %v786
    %909 = vmatpush1.msra.mxu0 %v785
    %910 = vmatprep.subr.mxu0 %v788
    %911 = vmatpush1.msra.mxu0 %v787
    %912 = vmatprep.subr.mxu0 %v790
    %913 = vmatpush1.msra.mxu0 %v789
    %914 = vmatprep.subr.mxu0 0.0
    %915 = vmatpush1.msra.mxu0 0.0
    %916 = vmatprep.subr.mxu0 0.0
    %917 = vmatpush1.msra.mxu0 0.0
    %918 = vmatprep.subr.mxu0 0.0
    %919 = vmatpush1.msra.mxu0 0.0
    %920 = vmatprep.subr.mxu0 0.0
    %921 = vmatpush1.msra.mxu0 0.0
    %922 = vmatprep.subr.mxu0 0.0
    %923 = vmatpush1.msra.mxu0 0.0
    %924 = vmatprep.subr.mxu0 0.0
    %925 = vmatpush1.msra.mxu0 0.0
    %926 = vmatprep.subr.mxu0 0.0
    %927 = vmatpush1.msra.mxu0 0.0
    %928 = vmatprep.subr.mxu0 0.0
    %929 = vmatpush1.msra.mxu0 0.0
    %930 = vmatprep.subr.mxu0 0.0
    %931 = vmatpush1.msra.mxu0 0.0
    %932 = vmatprep.subr.mxu0 0.0
    %933 = vmatpush1.msra.mxu0 0.0
    %934 = vmatprep.subr.mxu0 0.0
    %935 = vmatpush1.msra.mxu0 0.0
    %936 = vmatprep.subr.mxu0 0.0
    %937 = vmatpush1.msra.mxu0 0.0
    %938 = vmatprep.subr.mxu0 0.0
    %939 = vmatpush1.msra.mxu0 0.0
    %940 = vmatprep.subr.mxu0 0.0
    %941 = vmatpush1.msra.mxu0 0.0
    %942 = vmatprep.subr.mxu0 0.0
    %943 = vmatpush1.msra.mxu0 0.0
    %944 = vmatprep.subr.mxu0 0.0
    %945 = vmatpush1.msra.mxu0 0.0
    %946 = vmatprep.subr.mxu0 0.0
    %947 = vmatpush1.msra.mxu0 0.0
    %948 = vmatprep.subr.mxu0 0.0
    %949 = vmatpush1.msra.mxu0 0.0
    %950 = vmatprep.subr.mxu0 0.0
    %951 = vmatpush1.msra.mxu0 0.0
    %952 = vmatprep.subr.mxu0 0.0
    %953 = vmatpush1.msra.mxu0 0.0
    %954 = vmatprep.subr.mxu0 0.0
    %955 = vmatpush1.msra.mxu0 0.0
    %956 = vmatprep.subr.mxu0 0.0
    %957 = vmatpush1.msra.mxu0 0.0
    %958 = vmatprep.subr.mxu0 0.0
    %959 = vmatpush1.msra.mxu0 0.0
    %960 = vmatprep.subr.mxu0 0.0
    %961 = vmatpush1.msra.mxu0 0.0
    %962 = vmatprep.subr.mxu0 0.0
    %963 = vmatpush1.msra.mxu0 0.0
    %964 = vmatprep.subr.mxu0 0.0
    %965 = vmatpush1.msra.mxu0 0.0
    %966 = vmatprep.subr.mxu0 0.0
    %967 = vmatpush1.msra.mxu0 0.0
    %968 = vmatprep.subr.mxu0 0.0
    %969 = vmatpush1.msra.mxu0 0.0
    %970 = vmatprep.mubr.f32.mxu0 0.0
    %971 = vmatmul.mubr.f32.gmra.mrb[0].mxu0 %v904
    %v972 = vpop.f32.mrb[0].mxu0
    %v973 = vadd.f32 %v900, %v972
    %v974 = vpop.f32.mrb[0].mxu0
    %v975 = vadd.f32 %v900, %v974
    %976 = vdwg.mxu0
    %977 = vmatprep.subr.mxu0 %v888
    %978 = vmatpush1.msra.mxu0 %v887
    %979 = vmatprep.subr.mxu0 %v890
    %980 = vmatpush1.msra.mxu0 %v889
    %981 = vmatprep.subr.mxu0 %v892
    %982 = vmatpush1.msra.mxu0 %v891
    %983 = vmatprep.subr.mxu0 %v894
    %984 = vmatpush1.msra.mxu0 %v893
    %985 = vmatprep.subr.mxu0 0.0
    %986 = vmatpush1.msra.mxu0 0.0
    %987 = vmatprep.subr.mxu0 0.0
    %988 = vmatpush1.msra.mxu0 0.0
    %989 = vmatprep.subr.mxu0 0.0
    %990 = vmatpush1.msra.mxu0 0.0
    %991 = vmatprep.subr.mxu0 0.0
    %992 = vmatpush1.msra.mxu0 0.0
    %993 = vmatprep.subr.mxu0 0.0
    %994 = vmatpush1.msra.mxu0 0.0
    %995 = vmatprep.subr.mxu0 0.0
    %996 = vmatpush1.msra.mxu0 0.0
    %997 = vmatprep.subr.mxu0 0.0
    %998 = vmatpush1.msra.mxu0 0.0
    %999 = vmatprep.subr.mxu0 0.0
    %1000 = vmatpush1.msra.mxu0 0.0
    %1001 = vmatprep.subr.mxu0 0.0
    %1002 = vmatpush1.msra.mxu0 0.0
    %1003 = vmatprep.subr.mxu0 0.0
    %1004 = vmatpush1.msra.mxu0 0.0
    %1005 = vmatprep.subr.mxu0 0.0
    %1006 = vmatpush1.msra.mxu0 0.0
    %1007 = vmatprep.subr.mxu0 0.0
    %1008 = vmatpush1.msra.mxu0 0.0
    %1009 = vmatprep.subr.mxu0 0.0
    %1010 = vmatpush1.msra.mxu0 0.0
    %1011 = vmatprep.subr.mxu0 0.0
    %1012 = vmatpush1.msra.mxu0 0.0
    %1013 = vmatprep.subr.mxu0 0.0
    %1014 = vmatpush1.msra.mxu0 0.0
    %1015 = vmatprep.subr.mxu0 0.0
    %1016 = vmatpush1.msra.mxu0 0.0
    %1017 = vmatprep.subr.mxu0 0.0
    %1018 = vmatpush1.msra.mxu0 0.0
    %1019 = vmatprep.subr.mxu0 0.0
    %1020 = vmatpush1.msra.mxu0 0.0
    %1021 = vmatprep.subr.mxu0 0.0
    %1022 = vmatpush1.msra.mxu0 0.0
    %1023 = vmatprep.subr.mxu0 0.0
    %1024 = vmatpush1.msra.mxu0 0.0
    %1025 = vmatprep.subr.mxu0 0.0
    %1026 = vmatpush1.msra.mxu0 0.0
    %1027 = vmatprep.subr.mxu0 0.0
    %1028 = vmatpush1.msra.mxu0 0.0
    %1029 = vmatprep.subr.mxu0 0.0
    %1030 = vmatpush1.msra.mxu0 0.0
    %1031 = vmatprep.subr.mxu0 0.0
    %1032 = vmatpush1.msra.mxu0 0.0
    %1033 = vmatprep.subr.mxu0 0.0
    %1034 = vmatpush1.msra.mxu0 0.0
    %1035 = vmatprep.subr.mxu0 0.0
    %1036 = vmatpush1.msra.mxu0 0.0
    %1037 = vmatprep.subr.mxu0 0.0
    %1038 = vmatpush1.msra.mxu0 0.0
    %1039 = vmatprep.subr.mxu0 0.0
    %1040 = vmatpush1.msra.mxu0 0.0
    %1041 = vmatprep.mubr.f32.mxu0 0.0
    %1042 = vmatmul.mubr.f32.gmra.mrb[0].mxu0 %v904
    %v1043 = vpop.f32.mrb[0].mxu0
    %v1044 = vadd.f32 %v900, %v1043
    %v1045 = vpop.f32.mrb[0].mxu0
    %v1046 = vadd.f32 %v900, %v1045
    %1047 = vdwg.mxu0
    %v1048 = vld [vmem:[%s5] sm:$0xff]
    %v1049 = vld [vmem:[%s5 + $0x8] sm:$0xff]
    %v1050 = vld [vmem:[%s5 + $0x10] sm:$0xff]
    %v1051 = vld [vmem:[%s5 + $0x18] sm:$0xff]
    %v1052 = vld [vmem:[%s5 + $0x20] sm:$0xff]
    %v1053 = vld [vmem:[%s5 + $0x28] sm:$0xff]
    %v1054 = vld [vmem:[%s5 + $0x30] sm:$0xff]
    %v1055 = vld [vmem:[%s5 + $0x38] sm:$0xff]
    %v1056 = vld [vmem:[%s5 + $0x40] sm:$0xff]
    %v1057 = vld [vmem:[%s5 + $0x48] sm:$0xff]
    %v1058 = vld [vmem:[%s5 + $0x50] sm:$0xff]
    %v1059 = vld [vmem:[%s5 + $0x58] sm:$0xff]
    %v1060 = vld [vmem:[%s5 + $0x60] sm:$0xff]
    %v1061 = vld [vmem:[%s5 + $0x68] sm:$0xff]
    %v1062 = vld [vmem:[%s5 + $0x70] sm:$0xff]
    %v1063 = vld [vmem:[%s5 + $0x78] sm:$0xff]
    %v1064 = vld [vmem:[%s5 + $0x80] sm:$0xff]
    %v1065 = vld [vmem:[%s5 + $0x88] sm:$0xff]
    %v1066 = vld [vmem:[%s5 + $0x90] sm:$0xff]
    %v1067 = vld [vmem:[%s5 + $0x98] sm:$0xff]
    %v1068 = vld [vmem:[%s5 + $0xa0] sm:$0xff]
    %v1069 = vld [vmem:[%s5 + $0xa8] sm:$0xff]
    %v1070 = vld [vmem:[%s5 + $0xb0] sm:$0xff]
    %v1071 = vld [vmem:[%s5 + $0xb8] sm:$0xff]
    %v1072 = vld [vmem:[%s5 + $0xc0] sm:$0xff]
    %v1073 = vld [vmem:[%s5 + $0xc8] sm:$0xff]
    %v1074 = vld [vmem:[%s5 + $0xd0] sm:$0xff]
    %v1075 = vld [vmem:[%s5 + $0xd8] sm:$0xff]
    %v1076 = vld [vmem:[%s5 + $0xe0] sm:$0xff]
    %v1077 = vld [vmem:[%s5 + $0xe8] sm:$0xff]
    %v1078 = vld [vmem:[%s5 + $0xf0] sm:$0xff]
    %v1079 = vld [vmem:[%s5 + $0xf8] sm:$0xff]
    %v1080 = vld [vmem:[%s6] sm:$0xff]
    %v1081 = vld [vmem:[%s6 + $0x8] sm:$0xff]
    %v1082 = vld [vmem:[%s6 + $0x10] sm:$0xff]
    %v1083 = vld [vmem:[%s6 + $0x18] sm:$0xff]
    %v1084 = vld [vmem:[%s6 + $0x20] sm:$0xff]
    %v1085 = vld [vmem:[%s6 + $0x28] sm:$0xff]
    %v1086 = vld [vmem:[%s6 + $0x30] sm:$0xff]
    %v1087 = vld [vmem:[%s6 + $0x38] sm:$0xff]
    %v1088 = vld [vmem:[%s6 + $0x40] sm:$0xff]
    %v1089 = vld [vmem:[%s6 + $0x48] sm:$0xff]
    %v1090 = vld [vmem:[%s6 + $0x50] sm:$0xff]
    %v1091 = vld [vmem:[%s6 + $0x58] sm:$0xff]
    %v1092 = vld [vmem:[%s6 + $0x60] sm:$0xff]
    %v1093 = vld [vmem:[%s6 + $0x68] sm:$0xff]
    %v1094 = vld [vmem:[%s6 + $0x70] sm:$0xff]
    %v1095 = vld [vmem:[%s6 + $0x78] sm:$0xff]
    %v1096 = vld [vmem:[%s6 + $0x80] sm:$0xff]
    %v1097 = vld [vmem:[%s6 + $0x88] sm:$0xff]
    %v1098 = vld [vmem:[%s6 + $0x90] sm:$0xff]
    %v1099 = vld [vmem:[%s6 + $0x98] sm:$0xff]
    %v1100 = vld [vmem:[%s6 + $0xa0] sm:$0xff]
    %v1101 = vld [vmem:[%s6 + $0xa8] sm:$0xff]
    %v1102 = vld [vmem:[%s6 + $0xb0] sm:$0xff]
    %v1103 = vld [vmem:[%s6 + $0xb8] sm:$0xff]
    %v1104 = vld [vmem:[%s6 + $0xc0] sm:$0xff]
    %v1105 = vld [vmem:[%s6 + $0xc8] sm:$0xff]
    %v1106 = vld [vmem:[%s6 + $0xd0] sm:$0xff]
    %v1107 = vld [vmem:[%s6 + $0xd8] sm:$0xff]
    %v1108 = vld [vmem:[%s6 + $0xe0] sm:$0xff]
    %v1109 = vld [vmem:[%s6 + $0xe8] sm:$0xff]
    %v1110 = vld [vmem:[%s6 + $0xf0] sm:$0xff]
    %v1111 = vld [vmem:[%s6 + $0xf8] sm:$0xff]
    %v1112 = vld [vmem:[%s7] sm:$0xff]
    %v1113 = vld [vmem:[%s7 + $0x8] sm:$0xff]
    %v1114 = vld [vmem:[%s7 + $0x10] sm:$0xff]
    %v1115 = vld [vmem:[%s7 + $0x18] sm:$0xff]
    %v1116 = vld [vmem:[%s7 + $0x20] sm:$0xff]
    %v1117 = vld [vmem:[%s7 + $0x28] sm:$0xff]
    %v1118 = vld [vmem:[%s7 + $0x30] sm:$0xff]
    %v1119 = vld [vmem:[%s7 + $0x38] sm:$0xff]
    %v1120 = vld [vmem:[%s7 + $0x40] sm:$0xff]
    %v1121 = vld [vmem:[%s7 + $0x48] sm:$0xff]
    %v1122 = vld [vmem:[%s7 + $0x50] sm:$0xff]
    %v1123 = vld [vmem:[%s7 + $0x58] sm:$0xff]
    %v1124 = vld [vmem:[%s7 + $0x60] sm:$0xff]
    %v1125 = vld [vmem:[%s7 + $0x68] sm:$0xff]
    %v1126 = vld [vmem:[%s7 + $0x70] sm:$0xff]
    %v1127 = vld [vmem:[%s7 + $0x78] sm:$0xff]
    %v1128 = vld [vmem:[%s7 + $0x80] sm:$0xff]
    %v1129 = vld [vmem:[%s7 + $0x88] sm:$0xff]
    %v1130 = vld [vmem:[%s7 + $0x90] sm:$0xff]
    %v1131 = vld [vmem:[%s7 + $0x98] sm:$0xff]
    %v1132 = vld [vmem:[%s7 + $0xa0] sm:$0xff]
    %v1133 = vld [vmem:[%s7 + $0xa8] sm:$0xff]
    %v1134 = vld [vmem:[%s7 + $0xb0] sm:$0xff]
    %v1135 = vld [vmem:[%s7 + $0xb8] sm:$0xff]
    %v1136 = vld [vmem:[%s7 + $0xc0] sm:$0xff]
    %v1137 = vld [vmem:[%s7 + $0xc8] sm:$0xff]
    %v1138 = vld [vmem:[%s7 + $0xd0] sm:$0xff]
    %v1139 = vld [vmem:[%s7 + $0xd8] sm:$0xff]
    %v1140 = vld [vmem:[%s7 + $0xe0] sm:$0xff]
    %v1141 = vld [vmem:[%s7 + $0xe8] sm:$0xff]
    %v1142 = vld [vmem:[%s7 + $0xf0] sm:$0xff]
    %v1143 = vld [vmem:[%s7 + $0xf8] sm:$0xff]
    %v1144 = vld [vmem:[%s8] sm:$0x1]
    %v1145 = vld [vmem:[%s9] sm:$0x1]
    %v1146 = vld [vmem:[%s10] sm:$0x1]
    %1147 = vmatprep.subr.mxu0 0.0
    %1148 = vmatpush1.msra.mxu0 %v1048
    %1149 = vmatprep.subr.mxu0 0.0
    %1150 = vmatpush1.msra.mxu0 %v1049
    %1151 = vmatprep.subr.mxu0 0.0
    %1152 = vmatpush1.msra.mxu0 %v1050
    %1153 = vmatprep.subr.mxu0 0.0
    %1154 = vmatpush1.msra.mxu0 %v1051
    %1155 = vmatprep.subr.mxu0 0.0
    %1156 = vmatpush1.msra.mxu0 %v1052
    %1157 = vmatprep.subr.mxu0 0.0
    %1158 = vmatpush1.msra.mxu0 %v1053
    %1159 = vmatprep.subr.mxu0 0.0
    %1160 = vmatpush1.msra.mxu0 %v1054
    %1161 = vmatprep.subr.mxu0 0.0
    %1162 = vmatpush1.msra.mxu0 %v1055
    %1163 = vmatprep.subr.mxu0 0.0
    %1164 = vmatpush1.msra.mxu0 %v1056
    %1165 = vmatprep.subr.mxu0 0.0
    %1166 = vmatpush1.msra.mxu0 %v1057
    %1167 = vmatprep.subr.mxu0 0.0
    %1168 = vmatpush1.msra.mxu0 %v1058
    %1169 = vmatprep.subr.mxu0 0.0
    %1170 = vmatpush1.msra.mxu0 %v1059
    %1171 = vmatprep.subr.mxu0 0.0
    %1172 = vmatpush1.msra.mxu0 %v1060
    %1173 = vmatprep.subr.mxu0 0.0
    %1174 = vmatpush1.msra.mxu0 %v1061
    %1175 = vmatprep.subr.mxu0 0.0
    %1176 = vmatpush1.msra.mxu0 %v1062
    %1177 = vmatprep.subr.mxu0 0.0
    %1178 = vmatpush1.msra.mxu0 %v1063
    %1179 = vmatprep.subr.mxu0 0.0
    %1180 = vmatpush1.msra.mxu0 %v1064
    %1181 = vmatprep.subr.mxu0 0.0
    %1182 = vmatpush1.msra.mxu0 %v1065
    %1183 = vmatprep.subr.mxu0 0.0
    %1184 = vmatpush1.msra.mxu0 %v1066
    %1185 = vmatprep.subr.mxu0 0.0
    %1186 = vmatpush1.msra.mxu0 %v1067
    %1187 = vmatprep.subr.mxu0 0.0
    %1188 = vmatpush1.msra.mxu0 %v1068
    %1189 = vmatprep.subr.mxu0 0.0
    %1190 = vmatpush1.msra.mxu0 %v1069
    %1191 = vmatprep.subr.mxu0 0.0
    %1192 = vmatpush1.msra.mxu0 %v1070
    %1193 = vmatprep.subr.mxu0 0.0
    %1194 = vmatpush1.msra.mxu0 %v1071
    %1195 = vmatprep.subr.mxu0 0.0
    %1196 = vmatpush1.msra.mxu0 %v1072
    %1197 = vmatprep.subr.mxu0 0.0
    %1198 = vmatpush1.msra.mxu0 %v1073
    %1199 = vmatprep.subr.mxu0 0.0
    %1200 = vmatpush1.msra.mxu0 %v1074
    %1201 = vmatprep.subr.mxu0 0.0
    %1202 = vmatpush1.msra.mxu0 %v1075
    %1203 = vmatprep.subr.mxu0 0.0
    %1204 = vmatpush1.msra.mxu0 %v1076
    %1205 = vmatprep.subr.mxu0 0.0
    %1206 = vmatpush1.msra.mxu0 %v1077
    %1207 = vmatprep.subr.mxu0 0.0
    %1208 = vmatpush1.msra.mxu0 %v1078
    %1209 = vmatprep.subr.mxu0 0.0
    %1210 = vmatpush1.msra.mxu0 %v1079
    %1211 = vmatprep.mubr.f32.mxu0 %v975
    %1212 = vmatmul.mubr.f32.gmra.mrb[0].mxu0 %v973
    %v1213 = vpop.f32.mrb[0].mxu0
    %v1214 = vadd.f32 0.0, %v1213
    %v1215 = vpop.f32.mrb[0].mxu0
    %1216 = vdwg.mxu0
    %v1217 = vadd.f32 %v1144, %v1214
    %v1220 = vrot.slane %v973, 1
    %v1221 = vrot.slane %v975, 1
    %1224 = vmatprep.subr.mxu0 0.0
    %1225 = vmatpush1.msra.mxu0 %v1080
    %1226 = vmatprep.subr.mxu0 0.0
    %1227 = vmatpush1.msra.mxu0 %v1081
    %1228 = vmatprep.subr.mxu0 0.0
    %1229 = vmatpush1.msra.mxu0 %v1082
    %1230 = vmatprep.subr.mxu0 0.0
    %1231 = vmatpush1.msra.mxu0 %v1083
    %1232 = vmatprep.subr.mxu0 0.0
    %1233 = vmatpush1.msra.mxu0 %v1084
    %1234 = vmatprep.subr.mxu0 0.0
    %1235 = vmatpush1.msra.mxu0 %v1085
    %1236 = vmatprep.subr.mxu0 0.0
    %1237 = vmatpush1.msra.mxu0 %v1086
    %1238 = vmatprep.subr.mxu0 0.0
    %1239 = vmatpush1.msra.mxu0 %v1087
    %1240 = vmatprep.subr.mxu0 0.0
    %1241 = vmatpush1.msra.mxu0 %v1088
    %1242 = vmatprep.subr.mxu0 0.0
    %1243 = vmatpush1.msra.mxu0 %v1089
    %1244 = vmatprep.subr.mxu0 0.0
    %1245 = vmatpush1.msra.mxu0 %v1090
    %1246 = vmatprep.subr.mxu0 0.0
    %1247 = vmatpush1.msra.mxu0 %v1091
    %1248 = vmatprep.subr.mxu0 0.0
    %1249 = vmatpush1.msra.mxu0 %v1092
    %1250 = vmatprep.subr.mxu0 0.0
    %1251 = vmatpush1.msra.mxu0 %v1093
    %1252 = vmatprep.subr.mxu0 0.0
    %1253 = vmatpush1.msra.mxu0 %v1094
    %1254 = vmatprep.subr.mxu0 0.0
    %1255 = vmatpush1.msra.mxu0 %v1095
    %1256 = vmatprep.subr.mxu0 0.0
    %1257 = vmatpush1.msra.mxu0 %v1096
    %1258 = vmatprep.subr.mxu0 0.0
    %1259 = vmatpush1.msra.mxu0 %v1097
    %1260 = vmatprep.subr.mxu0 0.0
    %1261 = vmatpush1.msra.mxu0 %v1098
    %1262 = vmatprep.subr.mxu0 0.0
    %1263 = vmatpush1.msra.mxu0 %v1099
    %1264 = vmatprep.subr.mxu0 0.0
    %1265 = vmatpush1.msra.mxu0 %v1100
    %1266 = vmatprep.subr.mxu0 0.0
    %1267 = vmatpush1.msra.mxu0 %v1101
    %1268 = vmatprep.subr.mxu0 0.0
    %1269 = vmatpush1.msra.mxu0 %v1102
    %1270 = vmatprep.subr.mxu0 0.0
    %1271 = vmatpush1.msra.mxu0 %v1103
    %1272 = vmatprep.subr.mxu0 0.0
    %1273 = vmatpush1.msra.mxu0 %v1104
    %1274 = vmatprep.subr.mxu0 0.0
    %1275 = vmatpush1.msra.mxu0 %v1105
    %1276 = vmatprep.subr.mxu0 0.0
    %1277 = vmatpush1.msra.mxu0 %v1106
    %1278 = vmatprep.subr.mxu0 0.0
    %1279 = vmatpush1.msra.mxu0 %v1107
    %1280 = vmatprep.subr.mxu0 0.0
    %1281 = vmatpush1.msra.mxu0 %v1108
    %1282 = vmatprep.subr.mxu0 0.0
    %1283 = vmatpush1.msra.mxu0 %v1109
    %1284 = vmatprep.subr.mxu0 0.0
    %1285 = vmatpush1.msra.mxu0 %v1110
    %1286 = vmatprep.subr.mxu0 0.0
    %1287 = vmatpush1.msra.mxu0 %v1111
    %1288 = vmatprep.mubr.f32.mxu0 %v1221
    %1289 = vmatmul.mubr.f32.gmra.mrb[0].mxu0 %v1220
    %v1290 = vpop.f32.mrb[0].mxu0
    %v1291 = vadd.f32 0.0, %v1290
    %v1292 = vpop.f32.mrb[0].mxu0
    %1293 = vdwg.mxu0
    %v1294 = vadd.f32 %v1217, %v1291
    %v1295 = vrot.slane %v973, 2
    %v1296 = vrot.slane %v975, 2
    %1299 = vmatprep.subr.mxu0 0.0
    %1300 = vmatpush1.msra.mxu0 %v1112
    %1301 = vmatprep.subr.mxu0 0.0
    %1302 = vmatpush1.msra.mxu0 %v1113
    %1303 = vmatprep.subr.mxu0 0.0
    %1304 = vmatpush1.msra.mxu0 %v1114
    %1305 = vmatprep.subr.mxu0 0.0
    %1306 = vmatpush1.msra.mxu0 %v1115
    %1307 = vmatprep.subr.mxu0 0.0
    %1308 = vmatpush1.msra.mxu0 %v1116
    %1309 = vmatprep.subr.mxu0 0.0
    %1310 = vmatpush1.msra.mxu0 %v1117
    %1311 = vmatprep.subr.mxu0 0.0
    %1312 = vmatpush1.msra.mxu0 %v1118
    %1313 = vmatprep.subr.mxu0 0.0
    %1314 = vmatpush1.msra.mxu0 %v1119
    %1315 = vmatprep.subr.mxu0 0.0
    %1316 = vmatpush1.msra.mxu0 %v1120
    %1317 = vmatprep.subr.mxu0 0.0
    %1318 = vmatpush1.msra.mxu0 %v1121
    %1319 = vmatprep.subr.mxu0 0.0
    %1320 = vmatpush1.msra.mxu0 %v1122
    %1321 = vmatprep.subr.mxu0 0.0
    %1322 = vmatpush1.msra.mxu0 %v1123
    %1323 = vmatprep.subr.mxu0 0.0
    %1324 = vmatpush1.msra.mxu0 %v1124
    %1325 = vmatprep.subr.mxu0 0.0
    %1326 = vmatpush1.msra.mxu0 %v1125
    %1327 = vmatprep.subr.mxu0 0.0
    %1328 = vmatpush1.msra.mxu0 %v1126
    %1329 = vmatprep.subr.mxu0 0.0
    %1330 = vmatpush1.msra.mxu0 %v1127
    %1331 = vmatprep.subr.mxu0 0.0
    %1332 = vmatpush1.msra.mxu0 %v1128
    %1333 = vmatprep.subr.mxu0 0.0
    %1334 = vmatpush1.msra.mxu0 %v1129
    %1335 = vmatprep.subr.mxu0 0.0
    %1336 = vmatpush1.msra.mxu0 %v1130
    %1337 = vmatprep.subr.mxu0 0.0
    %1338 = vmatpush1.msra.mxu0 %v1131
    %1339 = vmatprep.subr.mxu0 0.0
    %1340 = vmatpush1.msra.mxu0 %v1132
    %1341 = vmatprep.subr.mxu0 0.0
    %1342 = vmatpush1.msra.mxu0 %v1133
    %1343 = vmatprep.subr.mxu0 0.0
    %1344 = vmatpush1.msra.mxu0 %v1134
    %1345 = vmatprep.subr.mxu0 0.0
    %1346 = vmatpush1.msra.mxu0 %v1135
    %1347 = vmatprep.subr.mxu0 0.0
    %1348 = vmatpush1.msra.mxu0 %v1136
    %1349 = vmatprep.subr.mxu0 0.0
    %1350 = vmatpush1.msra.mxu0 %v1137
    %1351 = vmatprep.subr.mxu0 0.0
    %1352 = vmatpush1.msra.mxu0 %v1138
    %1353 = vmatprep.subr.mxu0 0.0
    %1354 = vmatpush1.msra.mxu0 %v1139
    %1355 = vmatprep.subr.mxu0 0.0
    %1356 = vmatpush1.msra.mxu0 %v1140
    %1357 = vmatprep.subr.mxu0 0.0
    %1358 = vmatpush1.msra.mxu0 %v1141
    %1359 = vmatprep.subr.mxu0 0.0
    %1360 = vmatpush1.msra.mxu0 %v1142
    %1361 = vmatprep.subr.mxu0 0.0
    %1362 = vmatpush1.msra.mxu0 %v1143
    %1363 = vmatprep.mubr.f32.mxu0 %v1296
    %1364 = vmatmul.mubr.f32.gmra.mrb[0].mxu0 %v1295
    %v1365 = vpop.f32.mrb[0].mxu0
    %v1366 = vadd.f32 0.0, %v1365
    %v1367 = vpop.f32.mrb[0].mxu0
    %1368 = vdwg.mxu0
    %v1369 = vadd.f32 %v1294, %v1366
    %1371 = vrot.lane.b32.xlu0 %v1369, 112
    %v1372 = vpop.permute.xlu0 %1371
    %v1374 = vadd.f32 %v1369, %v1372
    %1375 = vrot.lane.b32.xlu0 %v1369, 96
    %v1376 = vpop.permute.xlu0 %1375
    %v1378 = vadd.f32 %v1374, %v1376
    %v1379 = vmul.f32 %v1378, 0.33333334
    %v1380 = vsub.f32 %v1369, %v1379
    %v1381 = vmul.f32 %v1380, %v1380
    %1383 = vrot.lane.b32.xlu0 %v1379, 16
    %v1384 = vpop.permute.xlu0 %1383
    %v1386 = vsub.f32 %v1369, %v1384
    %v1387 = vmul.f32 %v1386, %v1386
    %1389 = vrot.lane.b32.xlu0 %v1387, 112
    %v1390 = vpop.permute.xlu0 %1389
    %v1392 = vadd.f32 %v1381, %v1390
    %1393 = vrot.lane.b32.xlu0 %v1379, 32
    %v1394 = vpop.permute.xlu0 %1393
    %v1396 = vsub.f32 %v1369, %v1394
    %v1397 = vmul.f32 %v1396, %v1396
    %1399 = vrot.lane.b32.xlu0 %v1397, 96
    %v1400 = vpop.permute.xlu0 %1399
    %v1402 = vadd.f32 %v1392, %v1400
    %v1403 = vmul.f32 %v1402, 0.33333334
    %v1404 = vadd.f32 %v1403, 1e-06
    %v1405 = vrsqrt.pop %v1404
    %v1406 = vmul.f32 %v1380, %v1405
    %v1407 = vmul.f32 %v1145, %v1406
    %v1408 = vadd.f32 %v1407, %v1146
    %vm1409 = vcmask 122880
    %1410 = vst.msk [vmem:[#allocation2] sm:$0x1] %vm1409, %v1408
    %1412 = vrot.lane.b32.xlu0 %v1405, 16
    %v1413 = vpop.permute.xlu0 %1412
    %v1415 = vmul.f32 %v1386, %v1413
    %v1416 = vmul.f32 %v1145, %v1415
    %v1417 = vadd.f32 %v1416, %v1146
    %vm1418 = vcmask 254080
    %1419 = vst.msk [vmem:[#allocation2] sm:$0x1] %vm1418, %v1417
    %1420 = vrot.lane.b32.xlu0 %v1405, 32
    %v1421 = vpop.permute.xlu0 %1420
    %v1423 = vmul.f32 %v1396, %v1421
    %v1424 = vmul.f32 %v1145, %v1423
    %v1425 = vadd.f32 %v1424, %v1146
    %vm1426 = vcmask 385280
    %1427 = vst.msk [vmem:[#allocation2] sm:$0x1] %vm1426, %v1425
    %1428 = vmatprep.subr.mxu0 0.0
    %1429 = vmatpush1.msra.mxu0 %v1048
    %1430 = vmatprep.subr.mxu0 0.0
    %1431 = vmatpush1.msra.mxu0 %v1049
    %1432 = vmatprep.subr.mxu0 0.0
    %1433 = vmatpush1.msra.mxu0 %v1050
    %1434 = vmatprep.subr.mxu0 0.0
    %1435 = vmatpush1.msra.mxu0 %v1051
    %1436 = vmatprep.subr.mxu0 0.0
    %1437 = vmatpush1.msra.mxu0 %v1052
    %1438 = vmatprep.subr.mxu0 0.0
    %1439 = vmatpush1.msra.mxu0 %v1053
    %1440 = vmatprep.subr.mxu0 0.0
    %1441 = vmatpush1.msra.mxu0 %v1054
    %1442 = vmatprep.subr.mxu0 0.0
    %1443 = vmatpush1.msra.mxu0 %v1055
    %1444 = vmatprep.subr.mxu0 0.0
    %1445 = vmatpush1.msra.mxu0 %v1056
    %1446 = vmatprep.subr.mxu0 0.0
    %1447 = vmatpush1.msra.mxu0 %v1057
    %1448 = vmatprep.subr.mxu0 0.0
    %1449 = vmatpush1.msra.mxu0 %v1058
    %1450 = vmatprep.subr.mxu0 0.0
    %1451 = vmatpush1.msra.mxu0 %v1059
    %1452 = vmatprep.subr.mxu0 0.0
    %1453 = vmatpush1.msra.mxu0 %v1060
    %1454 = vmatprep.subr.mxu0 0.0
    %1455 = vmatpush1.msra.mxu0 %v1061
    %1456 = vmatprep.subr.mxu0 0.0
    %1457 = vmatpush1.msra.mxu0 %v1062
    %1458 = vmatprep.subr.mxu0 0.0
    %1459 = vmatpush1.msra.mxu0 %v1063
    %1460 = vmatprep.subr.mxu0 0.0
    %1461 = vmatpush1.msra.mxu0 %v1064
    %1462 = vmatprep.subr.mxu0 0.0
    %1463 = vmatpush1.msra.mxu0 %v1065
    %1464 = vmatprep.subr.mxu0 0.0
    %1465 = vmatpush1.msra.mxu0 %v1066
    %1466 = vmatprep.subr.mxu0 0.0
    %1467 = vmatpush1.msra.mxu0 %v1067
    %1468 = vmatprep.subr.mxu0 0.0
    %1469 = vmatpush1.msra.mxu0 %v1068
    %1470 = vmatprep.subr.mxu0 0.0
    %1471 = vmatpush1.msra.mxu0 %v1069
    %1472 = vmatprep.subr.mxu0 0.0
    %1473 = vmatpush1.msra.mxu0 %v1070
    %1474 = vmatprep.subr.mxu0 0.0
    %1475 = vmatpush1.msra.mxu0 %v1071
    %1476 = vmatprep.subr.mxu0 0.0
    %1477 = vmatpush1.msra.mxu0 %v1072
    %1478 = vmatprep.subr.mxu0 0.0
    %1479 = vmatpush1.msra.mxu0 %v1073
    %1480 = vmatprep.subr.mxu0 0.0
    %1481 = vmatpush1.msra.mxu0 %v1074
    %1482 = vmatprep.subr.mxu0 0.0
    %1483 = vmatpush1.msra.mxu0 %v1075
    %1484 = vmatprep.subr.mxu0 0.0
    %1485 = vmatpush1.msra.mxu0 %v1076
    %1486 = vmatprep.subr.mxu0 0.0
    %1487 = vmatpush1.msra.mxu0 %v1077
    %1488 = vmatprep.subr.mxu0 0.0
    %1489 = vmatpush1.msra.mxu0 %v1078
    %1490 = vmatprep.subr.mxu0 0.0
    %1491 = vmatpush1.msra.mxu0 %v1079
    %1492 = vmatprep.mubr.f32.mxu0 %v1046
    %1493 = vmatmul.mubr.f32.gmra.mrb[0].mxu0 %v1044
    %v1494 = vpop.f32.mrb[0].mxu0
    %v1495 = vadd.f32 0.0, %v1494
    %v1496 = vpop.f32.mrb[0].mxu0
    %1497 = vdwg.mxu0
    %v1498 = vadd.f32 %v1144, %v1495
    %v1501 = vrot.slane %v1044, 1
    %v1502 = vrot.slane %v1046, 1
    %1505 = vmatprep.subr.mxu0 0.0
    %1506 = vmatpush1.msra.mxu0 %v1080
    %1507 = vmatprep.subr.mxu0 0.0
    %1508 = vmatpush1.msra.mxu0 %v1081
    %1509 = vmatprep.subr.mxu0 0.0
    %1510 = vmatpush1.msra.mxu0 %v1082
    %1511 = vmatprep.subr.mxu0 0.0
    %1512 = vmatpush1.msra.mxu0 %v1083
    %1513 = vmatprep.subr.mxu0 0.0
    %1514 = vmatpush1.msra.mxu0 %v1084
    %1515 = vmatprep.subr.mxu0 0.0
    %1516 = vmatpush1.msra.mxu0 %v1085
    %1517 = vmatprep.subr.mxu0 0.0
    %1518 = vmatpush1.msra.mxu0 %v1086
    %1519 = vmatprep.subr.mxu0 0.0
    %1520 = vmatpush1.msra.mxu0 %v1087
    %1521 = vmatprep.subr.mxu0 0.0
    %1522 = vmatpush1.msra.mxu0 %v1088
    %1523 = vmatprep.subr.mxu0 0.0
    %1524 = vmatpush1.msra.mxu0 %v1089
    %1525 = vmatprep.subr.mxu0 0.0
    %1526 = vmatpush1.msra.mxu0 %v1090
    %1527 = vmatprep.subr.mxu0 0.0
    %1528 = vmatpush1.msra.mxu0 %v1091
    %1529 = vmatprep.subr.mxu0 0.0
    %1530 = vmatpush1.msra.mxu0 %v1092
    %1531 = vmatprep.subr.mxu0 0.0
    %1532 = vmatpush1.msra.mxu0 %v1093
    %1533 = vmatprep.subr.mxu0 0.0
    %1534 = vmatpush1.msra.mxu0 %v1094
    %1535 = vmatprep.subr.mxu0 0.0
    %1536 = vmatpush1.msra.mxu0 %v1095
    %1537 = vmatprep.subr.mxu0 0.0
    %1538 = vmatpush1.msra.mxu0 %v1096
    %1539 = vmatprep.subr.mxu0 0.0
    %1540 = vmatpush1.msra.mxu0 %v1097
    %1541 = vmatprep.subr.mxu0 0.0
    %1542 = vmatpush1.msra.mxu0 %v1098
    %1543 = vmatprep.subr.mxu0 0.0
    %1544 = vmatpush1.msra.mxu0 %v1099
    %1545 = vmatprep.subr.mxu0 0.0
    %1546 = vmatpush1.msra.mxu0 %v1100
    %1547 = vmatprep.subr.mxu0 0.0
    %1548 = vmatpush1.msra.mxu0 %v1101
    %1549 = vmatprep.subr.mxu0 0.0
    %1550 = vmatpush1.msra.mxu0 %v1102
    %1551 = vmatprep.subr.mxu0 0.0
    %1552 = vmatpush1.msra.mxu0 %v1103
    %1553 = vmatprep.subr.mxu0 0.0
    %1554 = vmatpush1.msra.mxu0 %v1104
    %1555 = vmatprep.subr.mxu0 0.0
    %1556 = vmatpush1.msra.mxu0 %v1105
    %1557 = vmatprep.subr.mxu0 0.0
    %1558 = vmatpush1.msra.mxu0 %v1106
    %1559 = vmatprep.subr.mxu0 0.0
    %1560 = vmatpush1.msra.mxu0 %v1107
    %1561 = vmatprep.subr.mxu0 0.0
    %1562 = vmatpush1.msra.mxu0 %v1108
    %1563 = vmatprep.subr.mxu0 0.0
    %1564 = vmatpush1.msra.mxu0 %v1109
    %1565 = vmatprep.subr.mxu0 0.0
    %1566 = vmatpush1.msra.mxu0 %v1110
    %1567 = vmatprep.subr.mxu0 0.0
    %1568 = vmatpush1.msra.mxu0 %v1111
    %1569 = vmatprep.mubr.f32.mxu0 %v1502
    %1570 = vmatmul.mubr.f32.gmra.mrb[0].mxu0 %v1501
    %v1571 = vpop.f32.mrb[0].mxu0
    %v1572 = vadd.f32 0.0, %v1571
    %v1573 = vpop.f32.mrb[0].mxu0
    %1574 = vdwg.mxu0
    %v1575 = vadd.f32 %v1498, %v1572
    %v1576 = vrot.slane %v1044, 2
    %v1577 = vrot.slane %v1046, 2
    %1580 = vmatprep.subr.mxu0 0.0
    %1581 = vmatpush1.msra.mxu0 %v1112
    %1582 = vmatprep.subr.mxu0 0.0
    %1583 = vmatpush1.msra.mxu0 %v1113
    %1584 = vmatprep.subr.mxu0 0.0
    %1585 = vmatpush1.msra.mxu0 %v1114
    %1586 = vmatprep.subr.mxu0 0.0
    %1587 = vmatpush1.msra.mxu0 %v1115
    %1588 = vmatprep.subr.mxu0 0.0
    %1589 = vmatpush1.msra.mxu0 %v1116
    %1590 = vmatprep.subr.mxu0 0.0
    %1591 = vmatpush1.msra.mxu0 %v1117
    %1592 = vmatprep.subr.mxu0 0.0
    %1593 = vmatpush1.msra.mxu0 %v1118
    %1594 = vmatprep.subr.mxu0 0.0
    %1595 = vmatpush1.msra.mxu0 %v1119
    %1596 = vmatprep.subr.mxu0 0.0
    %1597 = vmatpush1.msra.mxu0 %v1120
    %1598 = vmatprep.subr.mxu0 0.0
    %1599 = vmatpush1.msra.mxu0 %v1121
    %1600 = vmatprep.subr.mxu0 0.0
    %1601 = vmatpush1.msra.mxu0 %v1122
    %1602 = vmatprep.subr.mxu0 0.0
    %1603 = vmatpush1.msra.mxu0 %v1123
    %1604 = vmatprep.subr.mxu0 0.0
    %1605 = vmatpush1.msra.mxu0 %v1124
    %1606 = vmatprep.subr.mxu0 0.0
    %1607 = vmatpush1.msra.mxu0 %v1125
    %1608 = vmatprep.subr.mxu0 0.0
    %1609 = vmatpush1.msra.mxu0 %v1126
    %1610 = vmatprep.subr.mxu0 0.0
    %1611 = vmatpush1.msra.mxu0 %v1127
    %1612 = vmatprep.subr.mxu0 0.0
    %1613 = vmatpush1.msra.mxu0 %v1128
    %1614 = vmatprep.subr.mxu0 0.0
    %1615 = vmatpush1.msra.mxu0 %v1129
    %1616 = vmatprep.subr.mxu0 0.0
    %1617 = vmatpush1.msra.mxu0 %v1130
    %1618 = vmatprep.subr.mxu0 0.0
    %1619 = vmatpush1.msra.mxu0 %v1131
    %1620 = vmatprep.subr.mxu0 0.0
    %1621 = vmatpush1.msra.mxu0 %v1132
    %1622 = vmatprep.subr.mxu0 0.0
    %1623 = vmatpush1.msra.mxu0 %v1133
    %1624 = vmatprep.subr.mxu0 0.0
    %1625 = vmatpush1.msra.mxu0 %v1134
    %1626 = vmatprep.subr.mxu0 0.0
    %1627 = vmatpush1.msra.mxu0 %v1135
    %1628 = vmatprep.subr.mxu0 0.0
    %1629 = vmatpush1.msra.mxu0 %v1136
    %1630 = vmatprep.subr.mxu0 0.0
    %1631 = vmatpush1.msra.mxu0 %v1137
    %1632 = vmatprep.subr.mxu0 0.0
    %1633 = vmatpush1.msra.mxu0 %v1138
    %1634 = vmatprep.subr.mxu0 0.0
    %1635 = vmatpush1.msra.mxu0 %v1139
    %1636 = vmatprep.subr.mxu0 0.0
    %1637 = vmatpush1.msra.mxu0 %v1140
    %1638 = vmatprep.subr.mxu0 0.0
    %1639 = vmatpush1.msra.mxu0 %v1141
    %1640 = vmatprep.subr.mxu0 0.0
    %1641 = vmatpush1.msra.mxu0 %v1142
    %1642 = vmatprep.subr.mxu0 0.0
    %1643 = vmatpush1.msra.mxu0 %v1143
    %1644 = vmatprep.mubr.f32.mxu0 %v1577
    %1645 = vmatmul.mubr.f32.gmra.mrb[0].mxu0 %v1576
    %v1646 = vpop.f32.mrb[0].mxu0
    %v1647 = vadd.f32 0.0, %v1646
    %v1648 = vpop.f32.mrb[0].mxu0
    %1649 = vdwg.mxu0
    %v1650 = vadd.f32 %v1575, %v1647
    %1652 = vrot.lane.b32.xlu0 %v1650, 112
    %v1653 = vpop.permute.xlu0 %1652
    %v1655 = vadd.f32 %v1650, %v1653
    %1656 = vrot.lane.b32.xlu0 %v1650, 96
    %v1657 = vpop.permute.xlu0 %1656
    %v1659 = vadd.f32 %v1655, %v1657
    %v1660 = vmul.f32 %v1659, 0.33333334
    %v1661 = vsub.f32 %v1650, %v1660
    %v1662 = vmul.f32 %v1661, %v1661
    %1664 = vrot.lane.b32.xlu0 %v1660, 16
    %v1665 = vpop.permute.xlu0 %1664
    %v1667 = vsub.f32 %v1650, %v1665
    %v1668 = vmul.f32 %v1667, %v1667
    %1670 = vrot.lane.b32.xlu0 %v1668, 112
    %v1671 = vpop.permute.xlu0 %1670
    %v1673 = vadd.f32 %v1662, %v1671
    %1674 = vrot.lane.b32.xlu0 %v1660, 32
    %v1675 = vpop.permute.xlu0 %1674
    %v1677 = vsub.f32 %v1650, %v1675
    %v1678 = vmul.f32 %v1677, %v1677
    %1680 = vrot.lane.b32.xlu0 %v1678, 96
    %v1681 = vpop.permute.xlu0 %1680
    %v1683 = vadd.f32 %v1673, %v1681
    %v1684 = vmul.f32 %v1683, 0.33333334
    %v1685 = vadd.f32 %v1684, 1e-06
    %v1686 = vrsqrt.pop %v1685
    %v1687 = vmul.f32 %v1661, %v1686
    %v1688 = vmul.f32 %v1145, %v1687
    %v1689 = vadd.f32 %v1688, %v1146
    %1690 = vst.msk [vmem:[#allocation2 + $0x1] sm:$0x1] %vm1409, %v1689
    %1692 = vrot.lane.b32.xlu0 %v1686, 16
    %v1693 = vpop.permute.xlu0 %1692
    %v1695 = vmul.f32 %v1667, %v1693
    %v1696 = vmul.f32 %v1145, %v1695
    %v1697 = vadd.f32 %v1696, %v1146
    %1698 = vst.msk [vmem:[#allocation2 + $0x1] sm:$0x1] %vm1418, %v1697
    %1699 = vrot.lane.b32.xlu0 %v1686, 32
    %v1700 = vpop.permute.xlu0 %1699
    %v1702 = vmul.f32 %v1677, %v1700
    %v1703 = vmul.f32 %v1145, %v1702
    %v1704 = vadd.f32 %v1703, %v1146
    %1705 = vst.msk [vmem:[#allocation2 + $0x1] sm:$0x1] %vm1426, %v1704
    // Predicated region
    $region46: #{tpu_custom_call.1} parent=1 // pred_check
      _
    $region47: #{tpu_custom_call.1} parent=1 // pred_check_branch
      %1707 = sbr.rel (0) target = $region49
    $region48: #{tpu_custom_call.1} parent=1 // pred_region
      %s1709 = ssub.s32 32, 32
      %1710 = vsyncadd [#allocation3], %s1709
      %s1712 = sshll.u32 [#allocation2], 4
      %s1713 = int_to_ptr.vmem [resolvable:$true] %s1712
      %1715 = dma.vmem_to_hbm [thread:$0]  %s1713, 32, %s11, [#allocation3]
    $region49: #{tpu_custom_call.1} parent=1 // pred_fallthru
      _
    // Predicated region
    $region50: #{tpu_custom_call.1} parent=1 // pred_check
      _
    $region51: #{tpu_custom_call.1} parent=1 // pred_check_branch
      %1717 = sbr.rel (0) target = $region53
    $region52: #{tpu_custom_call.1} parent=1 // pred_region
      %1718 = dma.done [#allocation3], 32
    $region53: #{tpu_custom_call.1} parent=1 // pred_fallthru
      _
    %1719 = vsyncpa [#allocation3], 1

</llo_original>
